<compile_context>
chip_gen: v5e
topology: v5e:2x2
jax: 0.10.0
libtpu: 0.0.40
codegen_flags: <defaults>
</compile_context>

<pallas_src>
import functools

import jax
import jax.numpy as jnp
from jax.experimental import pallas as pl
from jax.experimental.pallas import tpu as pltpu


def _gated_attn_fused_kernel(x_ref, wab_ref, bab_ref, wc_ref, bc_ref, A_ref,
                             *, D, reduce_c):
    x = x_ref[...]                                           # (TN, L)

    # Fused hidden projection: one MXU pass produces [a_pre | b_pre].
    h = (jnp.dot(x, wab_ref[...], preferred_element_type=jnp.float32)
         + bab_ref[...])                                     # (TN, 2D)

    a = jnp.tanh(h[:, :D])                                   # (TN, D)  (EUP)
    b = jax.nn.sigmoid(h[:, D:])                             # (TN, D)  (EUP)
    g = a * b                                                # (TN, D)  (VPU)

    if reduce_c:
        # n_classes == 1: cross-lane reduce on the XLU instead of an MXU pass
        # that would fill only 1 of 128/256 output lanes.
        A = jnp.sum(g * wc_ref[...], axis=-1, keepdims=True) + bc_ref[...]
    else:
        A = (jnp.dot(g, wc_ref[...], preferred_element_type=jnp.float32)
             + bc_ref[...])                                  # (TN, C)

    A_ref[...] = A.astype(A_ref.dtype)


def _gated_attn_split_kernel(x_ref, wa_ref, ba_ref, wb_ref, bb_ref,
                             wc_ref, bc_ref, A_ref, *, reduce_c):
    # Variant for D not a multiple of 128: two MXU passes, no lane-slicing.
    x = x_ref[...]                                           # (TN, L)
    a = jnp.tanh(jnp.dot(x, wa_ref[...],
                         preferred_element_type=jnp.float32) + ba_ref[...])
    b = jax.nn.sigmoid(jnp.dot(x, wb_ref[...],
                               preferred_element_type=jnp.float32) + bb_ref[...])
    g = a * b                                                # (TN, D)

    if reduce_c:
        A = jnp.sum(g * wc_ref[...], axis=-1, keepdims=True) + bc_ref[...]
    else:
        A = (jnp.dot(g, wc_ref[...], preferred_element_type=jnp.float32)
             + bc_ref[...])
    A_ref[...] = A.astype(A_ref.dtype)


def _round_up(v, m):
    return (v + m - 1) // m * m


def attn_net_gated(x, wa, ba, wb, bb, wc, bc, *, tile_n=512):
    """A = (tanh(x@wa+ba) * sigmoid(x@wb+bb)) @ wc + bc ; returns (A, x)."""
    N, L = x.shape
    D = wa.shape[1]
    C = wc.shape[1]

    # Large row-tiles for DMA/MXU efficiency, never larger than round_up(N, 8).
    tile_n = max(8, min(tile_n, _round_up(N, 8)))
    grid = (pl.cdiv(N, tile_n),)   # ragged last block handled by Pallas masking

    reduce_c = (C == 1)
    if reduce_c:
        wc_in = wc.reshape(1, D)                             # lane-dense row
        wc_spec = pl.BlockSpec((1, D), lambda i: (0, 0))
    else:
        wc_in = wc                                           # (D, C)
        wc_spec = pl.BlockSpec((D, C), lambda i: (0, 0))
    bc2 = bc.reshape(1, C)

    fused = (D % 128 == 0)
    if fused:
        # Fuse the two hidden projections into one (L, 2D) weight / (1, 2D) bias.
        wab = jnp.concatenate([wa, wb], axis=1)              # (L, 2D)
        bab = jnp.concatenate([ba, bb]).reshape(1, 2 * D)    # (1, 2D)
        kernel = functools.partial(_gated_attn_fused_kernel, D=D,
                                   reduce_c=reduce_c)
        in_specs = [
            pl.BlockSpec((tile_n, L), lambda i: (i, 0)),     # x row tile
            pl.BlockSpec((L, 2 * D), lambda i: (0, 0)),      # fused Wa|Wb
            pl.BlockSpec((1, 2 * D), lambda i: (0, 0)),      # fused ba|bb
            wc_spec,                                         # Wc
            pl.BlockSpec((1, C), lambda i: (0, 0)),          # bc
        ]
        args = (x, wab, bab, wc_in, bc2)
    else:
        kernel = functools.partial(_gated_attn_split_kernel, reduce_c=reduce_c)
        in_specs = [
            pl.BlockSpec((tile_n, L), lambda i: (i, 0)),     # x row tile
            pl.BlockSpec((L, D), lambda i: (0, 0)),          # Wa
            pl.BlockSpec((1, D), lambda i: (0, 0)),          # ba
            pl.BlockSpec((L, D), lambda i: (0, 0)),          # Wb
            pl.BlockSpec((1, D), lambda i: (0, 0)),          # bb
            wc_spec,                                         # Wc
            pl.BlockSpec((1, C), lambda i: (0, 0)),          # bc
        ]
        args = (x, wa, ba.reshape(1, D), wb, bb.reshape(1, D), wc_in, bc2)

    A = pl.pallas_call(
        kernel,
        out_shape=jax.ShapeDtypeStruct((N, C), x.dtype),
        grid_spec=pltpu.PrefetchScalarGridSpec(
            num_scalar_prefetch=0,
            grid=grid,
            in_specs=in_specs,
            out_specs=pl.BlockSpec((tile_n, C), lambda i: (i, 0)),
        ),
        compiler_params=pltpu.CompilerParams(
            dimension_semantics=("parallel",)),
    )(*args)

    # The module returns (A, x); x is untouched, so return it directly
    # instead of copying it through the kernel (saves a full HBM round-trip).
    return A, x


def reference(x, wa, ba, wb, bb, wc, bc):
    a = jnp.tanh(x @ wa + ba)
    b = jax.nn.sigmoid(x @ wb + bb)
    A = (a * b) @ wc + bc
    return A, x


def _init_linear(kw, kb, fan_in, fan_out):
    # Deterministic parameter init (uniform, like nn.Linear default scale).
    bound = 1.0 / (fan_in ** 0.5)
    w = jax.random.uniform(kw, (fan_in, fan_out), jnp.float32, -bound, bound)
    b = jax.random.uniform(kb, (fan_out,), jnp.float32, -bound, bound)
    return w, b


if __name__ == "__main__":
    key = jax.random.PRNGKey(0)
    run = jax.jit(attn_net_gated)

    # ---- main config: small shapes consistent with the module defaults
    # (L input dim, D hidden, n_classes=1); N non-multiple of 8*tile to
    # exercise ragged-row masking.
    N, L, D, C = 300, 256, 128, 1
    kx, kwa, kba, kwb, kbb, kwc, kbc = jax.random.split(key, 7)
    x = jax.random.normal(kx, (N, L), dtype=jnp.float32)
    wa, ba = _init_linear(kwa, kba, L, D)   # attention_a Linear(L, D)
    wb, bb = _init_linear(kwb, kbb, L, D)   # attention_b Linear(L, D)
    wc, bc = _init_linear(kwc, kbc, D, C)   # attention_c Linear(D, C)

    # TODO(synk): nn.Dropout(0.25) (dropout=True branch) not implemented;
    # module default is dropout=False and forward here is inference-time.

    A, x_out = run(x, wa, ba, wb, bb, wc, bc)
    jax.block_until_ready((A, x_out))

    A_ref, x_ref = reference(x, wa, ba, wb, bb, wc, bc)
    assert A.shape == (N, C) and x_out.shape == (N, L)
    assert jnp.allclose(A, A_ref, atol=5e-5, rtol=5e-5)
    assert jnp.allclose(x_out, x_ref)

    # ---- secondary config: exercise the split-kernel path (D % 128 != 0)
    # and the MXU final projection (n_classes > 1), with a tiny ragged N.
    N2, L2, D2, C2 = 37, 128, 96, 3
    k2 = jax.random.split(jax.random.PRNGKey(1), 7)
    x2 = jax.random.normal(k2[0], (N2, L2), dtype=jnp.float32)
    wa2, ba2 = _init_linear(k2[1], k2[2], L2, D2)
    wb2, bb2 = _init_linear(k2[3], k2[4], L2, D2)
    wc2, bc2 = _init_linear(k2[5], k2[6], D2, C2)

    A2, x2_out = run(x2, wa2, ba2, wb2, bb2, wc2, bc2)
    jax.block_until_ready((A2, x2_out))
    A2_ref, _ = reference(x2, wa2, ba2, wb2, bb2, wc2, bc2)
    assert A2.shape == (N2, C2)
    assert jnp.allclose(A2, A2_ref, atol=5e-5, rtol=5e-5)

    print("KERNEL_OK")
</pallas_src>

<mosaic_0001>
module attributes {stable_mosaic.version = 11 : i64} {
  func.func @_gated_attn_fused_kernel(%arg0: i32, %arg1: memref<304x256xf32, #tpu.memory_space<vmem>>, %arg2: memref<256x256xf32, #tpu.memory_space<vmem>>, %arg3: memref<1x256xf32, #tpu.memory_space<vmem>>, %arg4: memref<1x128xf32, #tpu.memory_space<vmem>>, %arg5: memref<1x1xf32, #tpu.memory_space<vmem>>, %arg6: memref<304x1xf32, #tpu.memory_space<vmem>>) attributes {dimension_semantics = [#tpu.dimension_semantics<parallel>], iteration_bounds = array<i64: 1>, scalar_prefetch = 0 : i64, scratch_operands = 0 : i64, tpu.core_type = #tpu.core_type<tc>, window_params = [{transform_indices = @transform_0, window_bounds = array<i64: 304, 256>}, {pipeline_mode = #tpu.pipeline_mode<synchronous>, transform_indices = @transform_1, window_bounds = array<i64: 256, 256>}, {pipeline_mode = #tpu.pipeline_mode<synchronous>, transform_indices = @transform_2, window_bounds = array<i64: 1, 256>}, {pipeline_mode = #tpu.pipeline_mode<synchronous>, transform_indices = @transform_3, window_bounds = array<i64: 1, 128>}, {pipeline_mode = #tpu.pipeline_mode<synchronous>, transform_indices = @transform_4, window_bounds = array<i64: 1, 1>}, {transform_indices = @transform_5, window_bounds = array<i64: 304, 1>}]} {
    %c0 = arith.constant 0 : index
    %c0_0 = arith.constant 0 : index
    %0 = vector.load %arg1[%c0, %c0_0] : memref<304x256xf32, #tpu.memory_space<vmem>>, vector<304x256xf32>
    %c0_1 = arith.constant 0 : index
    %c0_2 = arith.constant 0 : index
    %1 = vector.load %arg2[%c0_1, %c0_2] : memref<256x256xf32, #tpu.memory_space<vmem>>, vector<256x256xf32>
    %cst = arith.constant dense<0.000000e+00> : vector<304x256xf32>
    %2 = tpu.matmul %0, %1, %cst {dimension_numbers = #tpu.dot_dimension_numbers<[1], [0], [0], [1], [0, 0, 1, 1], [], []>} : vector<304x256xf32>, vector<256x256xf32>, vector<304x256xf32> -> vector<304x256xf32>
    %c0_3 = arith.constant 0 : index
    %c0_4 = arith.constant 0 : index
    %3 = vector.load %arg3[%c0_3, %c0_4] : memref<1x256xf32, #tpu.memory_space<vmem>>, vector<1x256xf32>
    %4 = vector.broadcast %3 : vector<1x256xf32> to vector<304x256xf32>
    %5 = arith.addf %2, %4 : vector<304x256xf32>
    %6 = vector.extract_strided_slice %5 {offsets = [0, 0], sizes = [304, 128], strides = [1, 1]} : vector<304x256xf32> to vector<304x128xf32>
    %7 = math.tanh %6 : vector<304x128xf32>
    %8 = vector.extract_strided_slice %5 {offsets = [0, 128], sizes = [304, 128], strides = [1, 1]} : vector<304x256xf32> to vector<304x128xf32>
    %9 = arith.negf %8 : vector<304x128xf32>
    %10 = math.exp %9 : vector<304x128xf32>
    %cst_5 = arith.constant 1.000000e+00 : f32
    %11 = vector.broadcast %cst_5 : f32 to vector<304x128xf32>
    %12 = arith.addf %11, %10 : vector<304x128xf32>
    %13 = arith.divf %11, %12 : vector<304x128xf32>
    %14 = arith.mulf %7, %13 : vector<304x128xf32>
    %c0_6 = arith.constant 0 : index
    %c0_7 = arith.constant 0 : index
    %15 = vector.load %arg4[%c0_6, %c0_7] : memref<1x128xf32, #tpu.memory_space<vmem>>, vector<1x128xf32>
    %16 = vector.broadcast %15 : vector<1x128xf32> to vector<304x128xf32>
    %17 = arith.mulf %14, %16 : vector<304x128xf32>
    %cst_8 = arith.constant dense<0.000000e+00> : vector<304xf32>
    %18 = vector.multi_reduction <add>, %17, %cst_8 [1] : vector<304x128xf32> to vector<304xf32>
    %19 = vector.shape_cast %18 : vector<304xf32> to vector<304x1xf32>
    %c0_9 = arith.constant 0 : index
    %c0_10 = arith.constant 0 : index
    %20 = vector.load %arg5[%c0_9, %c0_10] : memref<1x1xf32, #tpu.memory_space<vmem>>, vector<1x1xf32>
    %21 = vector.broadcast %20 : vector<1x1xf32> to vector<304x1xf32>
    %22 = arith.addf %19, %21 : vector<304x1xf32>
    %c0_11 = arith.constant 0 : index
    %c0_12 = arith.constant 0 : index
    %23 = vector.load %arg6[%c0_11, %c0_12] : memref<304x1xf32, #tpu.memory_space<vmem>>, vector<304x1xf32>
    tpu.vector_store %arg6[%c0_11, %c0_12], %22 {strides = array<i32>} : memref<304x1xf32, #tpu.memory_space<vmem>>, vector<304x1xf32>,
    return
  }
  func.func @transform_0(%arg0: i32) -> (i32, i32) {
    %c0_i32 = arith.constant 0 : i32
    %c0_i32_0 = arith.constant 0 : i32
    return %arg0, %c0_i32 : i32, i32
  }
  func.func @transform_1(%arg0: i32) -> (i32, i32) {
    %c0_i32 = arith.constant 0 : i32
    %c0_i32_0 = arith.constant 0 : i32
    %c0_i32_1 = arith.constant 0 : i32
    return %c0_i32, %c0_i32_0 : i32, i32
  }
  func.func @transform_2(%arg0: i32) -> (i32, i32) {
    %c0_i32 = arith.constant 0 : i32
    %c0_i32_0 = arith.constant 0 : i32
    %c0_i32_1 = arith.constant 0 : i32
    return %c0_i32, %c0_i32_0 : i32, i32
  }
  func.func @transform_3(%arg0: i32) -> (i32, i32) {
    %c0_i32 = arith.constant 0 : i32
    %c0_i32_0 = arith.constant 0 : i32
    %c0_i32_1 = arith.constant 0 : i32
    return %c0_i32, %c0_i32_0 : i32, i32
  }
  func.func @transform_4(%arg0: i32) -> (i32, i32) {
    %c0_i32 = arith.constant 0 : i32
    %c0_i32_0 = arith.constant 0 : i32
    %c0_i32_1 = arith.constant 0 : i32
    return %c0_i32, %c0_i32_0 : i32, i32
  }
  func.func @transform_5(%arg0: i32) -> (i32, i32) {
    %c0_i32 = arith.constant 0 : i32
    %c0_i32_0 = arith.constant 0 : i32
    return %arg0, %c0_i32 : i32, i32
  }
}

</mosaic_0001>

<llo_original>
// kernel: attn_net_gated.1
$region0: #{attn_net_gated.1}
  #allocation0 [shape = 'u32[]', space=smem, size = 0x4, offset = 0x4, fixed_abs, tag = 'smem constant byte address 0x4 - core index']
  #allocation1 [shape = 'u32[72,128]{1,0:T(1,128)}', space=vmem, size = 0x9000, scoped, tag = 'internal scratch']
  #allocation2 [shape = 'f32[1,1]{1,0:T(1,128)S(1)}', space=vmem, size = 0x200, scoped, tag = 'scoped memory for attn_net_gated.1']
  %s0 = inlined_call_operand.vmem [shape: f32[300,256], index: 0, kind: input, shape index: {}]
  %s1 = inlined_call_operand.vmem [shape: f32[256,256], index: 1, kind: input, shape index: {}]
  %s2 = inlined_call_operand.vmem [shape: f32[1,256], index: 2, kind: input, shape index: {}]
  %s3 = inlined_call_operand.vmem [shape: f32[1,128], index: 3, kind: input, shape index: {}]
  %s4 = inlined_call_operand.<no memory space> [shape: f32[1,1], index: 4, kind: input, shape index: {}]
  %s5 = inlined_call_operand.vmem [shape: f32[300,1], index: 5, kind: output, shape index: {}]
  %s6 = sld [smem:[#allocation0]]
  $region30: #{attn_net_gated.1} parent=0
    _
  %s8 = ssub.s32 1, %s6
  %s9 = scalar_select 0, %s8, %s6
  %v10 = vstv %s4
  %11 = vst [vmem:[#allocation2] sm:$0x1] %v10
  // Predicated region
  $region2: #{attn_net_gated.1} parent=0 // pred_check
    _
  $region3: #{attn_net_gated.1} parent=0 // pred_check_branch
    %13 = sbr.rel (0) target = $region5
  $region4: #{attn_net_gated.1} parent=0 // pred_region
    _
  $region5: #{attn_net_gated.1} parent=0 // pred_fallthru
    _
  // Predicated region
  $region6: #{attn_net_gated.1} parent=0 // pred_check
    _
  $region7: #{attn_net_gated.1} parent=0 // pred_check_branch
    %15 = sbr.rel (0) target = $region9
  $region8: #{attn_net_gated.1} parent=0 // pred_region
    _
  $region9: #{attn_net_gated.1} parent=0 // pred_fallthru
    _
  // Predicated region
  $region10: #{attn_net_gated.1} parent=0 // pred_check
    _
  $region11: #{attn_net_gated.1} parent=0 // pred_check_branch
    %17 = sbr.rel (0) target = $region13
  $region12: #{attn_net_gated.1} parent=0 // pred_region
    _
  $region13: #{attn_net_gated.1} parent=0 // pred_fallthru
    _
  // Predicated region
  $region14: #{attn_net_gated.1} parent=0 // pred_check
    _
  $region15: #{attn_net_gated.1} parent=0 // pred_check_branch
    %19 = sbr.rel (0) target = $region17
  $region16: #{attn_net_gated.1} parent=0 // pred_region
    _
  $region17: #{attn_net_gated.1} parent=0 // pred_fallthru
    _
  // Predicated region
  $region18: #{attn_net_gated.1} parent=0 // pred_check
    _
  $region19: #{attn_net_gated.1} parent=0 // pred_check_branch
    %21 = sbr.rel (0) target = $region21
  $region20: #{attn_net_gated.1} parent=0 // pred_region
    _
  $region21: #{attn_net_gated.1} parent=0 // pred_fallthru
    _
  %v22 = vld [vmem:[%s0] sm:$0xff]
  %v23 = vld [vmem:[%s0 + $0x8] sm:$0xff]
  %v24 = vld [vmem:[%s0 + $0x10] sm:$0xff]
  %v25 = vld [vmem:[%s0 + $0x18] sm:$0xff]
  %v26 = vld [vmem:[%s0 + $0x20] sm:$0xff]
  %v27 = vld [vmem:[%s0 + $0x28] sm:$0xff]
  %v28 = vld [vmem:[%s0 + $0x30] sm:$0xff]
  %v29 = vld [vmem:[%s0 + $0x38] sm:$0xff]
  %v30 = vld [vmem:[%s0 + $0x40] sm:$0xff]
  %v31 = vld [vmem:[%s0 + $0x48] sm:$0xff]
  %v32 = vld [vmem:[%s0 + $0x50] sm:$0xff]
  %v33 = vld [vmem:[%s0 + $0x58] sm:$0xff]
  %v34 = vld [vmem:[%s0 + $0x60] sm:$0xff]
  %v35 = vld [vmem:[%s0 + $0x68] sm:$0xff]
  %v36 = vld [vmem:[%s0 + $0x70] sm:$0xff]
  %v37 = vld [vmem:[%s0 + $0x78] sm:$0xff]
  %v38 = vld [vmem:[%s0 + $0x80] sm:$0xff]
  %v39 = vld [vmem:[%s0 + $0x88] sm:$0xff]
  %v40 = vld [vmem:[%s0 + $0x90] sm:$0xff]
  %v41 = vld [vmem:[%s0 + $0x98] sm:$0xff]
  %v42 = vld [vmem:[%s0 + $0xa0] sm:$0xff]
  %v43 = vld [vmem:[%s0 + $0xa8] sm:$0xff]
  %v44 = vld [vmem:[%s0 + $0xb0] sm:$0xff]
  %v45 = vld [vmem:[%s0 + $0xb8] sm:$0xff]
  %v46 = vld [vmem:[%s0 + $0xc0] sm:$0xff]
  %v47 = vld [vmem:[%s0 + $0xc8] sm:$0xff]
  %v48 = vld [vmem:[%s0 + $0xd0] sm:$0xff]
  %v49 = vld [vmem:[%s0 + $0xd8] sm:$0xff]
  %v50 = vld [vmem:[%s0 + $0xe0] sm:$0xff]
  %v51 = vld [vmem:[%s0 + $0xe8] sm:$0xff]
  %v52 = vld [vmem:[%s0 + $0xf0] sm:$0xff]
  %v53 = vld [vmem:[%s0 + $0xf8] sm:$0xff]
  %v54 = vld [vmem:[%s0 + $0x100] sm:$0xff]
  %v55 = vld [vmem:[%s0 + $0x108] sm:$0xff]
  %v56 = vld [vmem:[%s0 + $0x110] sm:$0xff]
  %v57 = vld [vmem:[%s0 + $0x118] sm:$0xff]
  %v58 = vld [vmem:[%s0 + $0x120] sm:$0xff]
  %v59 = vld [vmem:[%s0 + $0x128] sm:$0xff]
  %v60 = vld [vmem:[%s0 + $0x130] sm:$0xff]
  %v61 = vld [vmem:[%s0 + $0x138] sm:$0xff]
  %v62 = vld [vmem:[%s0 + $0x140] sm:$0xff]
  %v63 = vld [vmem:[%s0 + $0x148] sm:$0xff]
  %v64 = vld [vmem:[%s0 + $0x150] sm:$0xff]
  %v65 = vld [vmem:[%s0 + $0x158] sm:$0xff]
  %v66 = vld [vmem:[%s0 + $0x160] sm:$0xff]
  %v67 = vld [vmem:[%s0 + $0x168] sm:$0xff]
  %v68 = vld [vmem:[%s0 + $0x170] sm:$0xff]
  %v69 = vld [vmem:[%s0 + $0x178] sm:$0xff]
  %v70 = vld [vmem:[%s0 + $0x180] sm:$0xff]
  %v71 = vld [vmem:[%s0 + $0x188] sm:$0xff]
  %v72 = vld [vmem:[%s0 + $0x190] sm:$0xff]
  %v73 = vld [vmem:[%s0 + $0x198] sm:$0xff]
  %v74 = vld [vmem:[%s0 + $0x1a0] sm:$0xff]
  %v75 = vld [vmem:[%s0 + $0x1a8] sm:$0xff]
  %v76 = vld [vmem:[%s0 + $0x1b0] sm:$0xff]
  %v77 = vld [vmem:[%s0 + $0x1b8] sm:$0xff]
  %v78 = vld [vmem:[%s0 + $0x1c0] sm:$0xff]
  %v79 = vld [vmem:[%s0 + $0x1c8] sm:$0xff]
  %v80 = vld [vmem:[%s0 + $0x1d0] sm:$0xff]
  %v81 = vld [vmem:[%s0 + $0x1d8] sm:$0xff]
  %v82 = vld [vmem:[%s0 + $0x1e0] sm:$0xff]
  %v83 = vld [vmem:[%s0 + $0x1e8] sm:$0xff]
  %v84 = vld [vmem:[%s0 + $0x1f0] sm:$0xff]
  %v85 = vld [vmem:[%s0 + $0x1f8] sm:$0xff]
  %v86 = vld [vmem:[%s0 + $0x200] sm:$0xff]
  %v87 = vld [vmem:[%s0 + $0x208] sm:$0xff]
  %v88 = vld [vmem:[%s0 + $0x210] sm:$0xff]
  %v89 = vld [vmem:[%s0 + $0x218] sm:$0xff]
  %v90 = vld [vmem:[%s0 + $0x220] sm:$0xff]
  %v91 = vld [vmem:[%s0 + $0x228] sm:$0xff]
  %v92 = vld [vmem:[%s0 + $0x230] sm:$0xff]
  %v93 = vld [vmem:[%s0 + $0x238] sm:$0xff]
  %v94 = vld [vmem:[%s0 + $0x240] sm:$0xff]
  %v95 = vld [vmem:[%s0 + $0x248] sm:$0xff]
  %v96 = vld [vmem:[%s0 + $0x250] sm:$0xff]
  %v97 = vld [vmem:[%s0 + $0x258] sm:$0xff]
  %v98 = vld [vmem:[%s1] sm:$0xff]
  %v99 = vld [vmem:[%s1 + $0x8] sm:$0xff]
  %v100 = vld [vmem:[%s1 + $0x10] sm:$0xff]
  %v101 = vld [vmem:[%s1 + $0x18] sm:$0xff]
  %v102 = vld [vmem:[%s1 + $0x20] sm:$0xff]
  %v103 = vld [vmem:[%s1 + $0x28] sm:$0xff]
  %v104 = vld [vmem:[%s1 + $0x30] sm:$0xff]
  %v105 = vld [vmem:[%s1 + $0x38] sm:$0xff]
  %v106 = vld [vmem:[%s1 + $0x40] sm:$0xff]
  %v107 = vld [vmem:[%s1 + $0x48] sm:$0xff]
  %v108 = vld [vmem:[%s1 + $0x50] sm:$0xff]
  %v109 = vld [vmem:[%s1 + $0x58] sm:$0xff]
  %v110 = vld [vmem:[%s1 + $0x60] sm:$0xff]
  %v111 = vld [vmem:[%s1 + $0x68] sm:$0xff]
  %v112 = vld [vmem:[%s1 + $0x70] sm:$0xff]
  %v113 = vld [vmem:[%s1 + $0x78] sm:$0xff]
  %v114 = vld [vmem:[%s1 + $0x80] sm:$0xff]
  %v115 = vld [vmem:[%s1 + $0x88] sm:$0xff]
  %v116 = vld [vmem:[%s1 + $0x90] sm:$0xff]
  %v117 = vld [vmem:[%s1 + $0x98] sm:$0xff]
  %v118 = vld [vmem:[%s1 + $0xa0] sm:$0xff]
  %v119 = vld [vmem:[%s1 + $0xa8] sm:$0xff]
  %v120 = vld [vmem:[%s1 + $0xb0] sm:$0xff]
  %v121 = vld [vmem:[%s1 + $0xb8] sm:$0xff]
  %v122 = vld [vmem:[%s1 + $0xc0] sm:$0xff]
  %v123 = vld [vmem:[%s1 + $0xc8] sm:$0xff]
  %v124 = vld [vmem:[%s1 + $0xd0] sm:$0xff]
  %v125 = vld [vmem:[%s1 + $0xd8] sm:$0xff]
  %v126 = vld [vmem:[%s1 + $0xe0] sm:$0xff]
  %v127 = vld [vmem:[%s1 + $0xe8] sm:$0xff]
  %v128 = vld [vmem:[%s1 + $0xf0] sm:$0xff]
  %v129 = vld [vmem:[%s1 + $0xf8] sm:$0xff]
  %v130 = vld [vmem:[%s1 + $0x100] sm:$0xff]
  %v131 = vld [vmem:[%s1 + $0x108] sm:$0xff]
  %v132 = vld [vmem:[%s1 + $0x110] sm:$0xff]
  %v133 = vld [vmem:[%s1 + $0x118] sm:$0xff]
  %v134 = vld [vmem:[%s1 + $0x120] sm:$0xff]
  %v135 = vld [vmem:[%s1 + $0x128] sm:$0xff]
  %v136 = vld [vmem:[%s1 + $0x130] sm:$0xff]
  %v137 = vld [vmem:[%s1 + $0x138] sm:$0xff]
  %v138 = vld [vmem:[%s1 + $0x140] sm:$0xff]
  %v139 = vld [vmem:[%s1 + $0x148] sm:$0xff]
  %v140 = vld [vmem:[%s1 + $0x150] sm:$0xff]
  %v141 = vld [vmem:[%s1 + $0x158] sm:$0xff]
  %v142 = vld [vmem:[%s1 + $0x160] sm:$0xff]
  %v143 = vld [vmem:[%s1 + $0x168] sm:$0xff]
  %v144 = vld [vmem:[%s1 + $0x170] sm:$0xff]
  %v145 = vld [vmem:[%s1 + $0x178] sm:$0xff]
  %v146 = vld [vmem:[%s1 + $0x180] sm:$0xff]
  %v147 = vld [vmem:[%s1 + $0x188] sm:$0xff]
  %v148 = vld [vmem:[%s1 + $0x190] sm:$0xff]
  %v149 = vld [vmem:[%s1 + $0x198] sm:$0xff]
  %v150 = vld [vmem:[%s1 + $0x1a0] sm:$0xff]
  %v151 = vld [vmem:[%s1 + $0x1a8] sm:$0xff]
  %v152 = vld [vmem:[%s1 + $0x1b0] sm:$0xff]
  %v153 = vld [vmem:[%s1 + $0x1b8] sm:$0xff]
  %v154 = vld [vmem:[%s1 + $0x1c0] sm:$0xff]
  %v155 = vld [vmem:[%s1 + $0x1c8] sm:$0xff]
  %v156 = vld [vmem:[%s1 + $0x1d0] sm:$0xff]
  %v157 = vld [vmem:[%s1 + $0x1d8] sm:$0xff]
  %v158 = vld [vmem:[%s1 + $0x1e0] sm:$0xff]
  %v159 = vld [vmem:[%s1 + $0x1e8] sm:$0xff]
  %v160 = vld [vmem:[%s1 + $0x1f0] sm:$0xff]
  %v161 = vld [vmem:[%s1 + $0x1f8] sm:$0xff]
  %v162 = vld [vmem:[%s2] sm:$0x3]
  %v164 = vperm.slane %v162, 0
  %v165 = vperm.slane %v162, 1
  %168 = vmatpush.msra.mxu0 %v128
  %169 = vmatpush.msra.mxu0 %v126
  %170 = vmatpush.msra.mxu0 %v124
  %171 = vmatpush.msra.mxu0 %v122
  %172 = vmatpush.msra.mxu0 %v120
  %173 = vmatpush.msra.mxu0 %v118
  %174 = vmatpush.msra.mxu0 %v116
  %175 = vmatpush.msra.mxu0 %v114
  %176 = vmatpush.msra.mxu0 %v112
  %177 = vmatpush.msra.mxu0 %v110
  %178 = vmatpush.msra.mxu0 %v108
  %179 = vmatpush.msra.mxu0 %v106
  %180 = vmatpush.msra.mxu0 %v104
  %181 = vmatpush.msra.mxu0 %v102
  %182 = vmatpush.msra.mxu0 %v100
  %183 = vmatpush.msra.mxu0 %v98
  %184 = vmatmul.f32.gmra.mxu0 %v22
  %v185 = vpop.f32.mrf.mxu0
  %v186 = vadd.f32 %v164, %v185
  %187 = vmatmul.f32.gmra.mxu0 %v24
  %v188 = vpop.f32.mrf.mxu0
  %v189 = vadd.f32 %v164, %v188
  %190 = vmatmul.f32.gmra.mxu0 %v26
  %v191 = vpop.f32.mrf.mxu0
  %v192 = vadd.f32 %v164, %v191
  %193 = vmatmul.f32.gmra.mxu0 %v28
  %v194 = vpop.f32.mrf.mxu0
  %v195 = vadd.f32 %v164, %v194
  %196 = vmatmul.f32.gmra.mxu0 %v30
  %v197 = vpop.f32.mrf.mxu0
  %v198 = vadd.f32 %v164, %v197
  %199 = vmatmul.f32.gmra.mxu0 %v32
  %v200 = vpop.f32.mrf.mxu0
  %v201 = vadd.f32 %v164, %v200
  %202 = vmatmul.f32.gmra.mxu0 %v34
  %v203 = vpop.f32.mrf.mxu0
  %v204 = vadd.f32 %v164, %v203
  %205 = vmatmul.f32.gmra.mxu0 %v36
  %v206 = vpop.f32.mrf.mxu0
  %v207 = vadd.f32 %v164, %v206
  %208 = vmatmul.f32.gmra.mxu0 %v38
  %v209 = vpop.f32.mrf.mxu0
  %v210 = vadd.f32 %v164, %v209
  %211 = vmatmul.f32.gmra.mxu0 %v40
  %v212 = vpop.f32.mrf.mxu0
  %v213 = vadd.f32 %v164, %v212
  %214 = vmatmul.f32.gmra.mxu0 %v42
  %v215 = vpop.f32.mrf.mxu0
  %v216 = vadd.f32 %v164, %v215
  %217 = vmatmul.f32.gmra.mxu0 %v44
  %v218 = vpop.f32.mrf.mxu0
  %v219 = vadd.f32 %v164, %v218
  %220 = vmatmul.f32.gmra.mxu0 %v46
  %v221 = vpop.f32.mrf.mxu0
  %v222 = vadd.f32 %v164, %v221
  %223 = vmatmul.f32.gmra.mxu0 %v48
  %v224 = vpop.f32.mrf.mxu0
  %v225 = vadd.f32 %v164, %v224
  %226 = vmatmul.f32.gmra.mxu0 %v50
  %v227 = vpop.f32.mrf.mxu0
  %v228 = vadd.f32 %v164, %v227
  %229 = vmatmul.f32.gmra.mxu0 %v52
  %v230 = vpop.f32.mrf.mxu0
  %v231 = vadd.f32 %v164, %v230
  %232 = vmatmul.f32.gmra.mxu0 %v54
  %v233 = vpop.f32.mrf.mxu0
  %v234 = vadd.f32 %v164, %v233
  %235 = vmatmul.f32.gmra.mxu0 %v56
  %v236 = vpop.f32.mrf.mxu0
  %v237 = vadd.f32 %v164, %v236
  %238 = vmatmul.f32.gmra.mxu0 %v58
  %v239 = vpop.f32.mrf.mxu0
  %v240 = vadd.f32 %v164, %v239
  %241 = vmatmul.f32.gmra.mxu0 %v60
  %v242 = vpop.f32.mrf.mxu0
  %v243 = vadd.f32 %v164, %v242
  %244 = vmatmul.f32.gmra.mxu0 %v62
  %v245 = vpop.f32.mrf.mxu0
  %v246 = vadd.f32 %v164, %v245
  %247 = vmatmul.f32.gmra.mxu0 %v64
  %v248 = vpop.f32.mrf.mxu0
  %v249 = vadd.f32 %v164, %v248
  %250 = vmatmul.f32.gmra.mxu0 %v66
  %v251 = vpop.f32.mrf.mxu0
  %v252 = vadd.f32 %v164, %v251
  %253 = vmatmul.f32.gmra.mxu0 %v68
  %v254 = vpop.f32.mrf.mxu0
  %v255 = vadd.f32 %v164, %v254
  %256 = vmatmul.f32.gmra.mxu0 %v70
  %v257 = vpop.f32.mrf.mxu0
  %v258 = vadd.f32 %v164, %v257
  %259 = vmatmul.f32.gmra.mxu0 %v72
  %v260 = vpop.f32.mrf.mxu0
  %v261 = vadd.f32 %v164, %v260
  %262 = vmatmul.f32.gmra.mxu0 %v74
  %v263 = vpop.f32.mrf.mxu0
  %v264 = vadd.f32 %v164, %v263
  %265 = vmatmul.f32.gmra.mxu0 %v76
  %v266 = vpop.f32.mrf.mxu0
  %v267 = vadd.f32 %v164, %v266
  %268 = vmatmul.f32.gmra.mxu0 %v78
  %v269 = vpop.f32.mrf.mxu0
  %v270 = vadd.f32 %v164, %v269
  %271 = vmatmul.f32.gmra.mxu0 %v80
  %v272 = vpop.f32.mrf.mxu0
  %v273 = vadd.f32 %v164, %v272
  %274 = vmatmul.f32.gmra.mxu0 %v82
  %v275 = vpop.f32.mrf.mxu0
  %v276 = vadd.f32 %v164, %v275
  %277 = vmatmul.f32.gmra.mxu0 %v84
  %v278 = vpop.f32.mrf.mxu0
  %v279 = vadd.f32 %v164, %v278
  %280 = vmatmul.f32.gmra.mxu0 %v86
  %v281 = vpop.f32.mrf.mxu0
  %v282 = vadd.f32 %v164, %v281
  %283 = vmatmul.f32.gmra.mxu0 %v88
  %v284 = vpop.f32.mrf.mxu0
  %v285 = vadd.f32 %v164, %v284
  %286 = vmatmul.f32.gmra.mxu0 %v90
  %v287 = vpop.f32.mrf.mxu0
  %v288 = vadd.f32 %v164, %v287
  %289 = vmatmul.f32.gmra.mxu0 %v92
  %v290 = vpop.f32.mrf.mxu0
  %v291 = vadd.f32 %v164, %v290
  %292 = vmatmul.f32.gmra.mxu0 %v94
  %v293 = vpop.f32.mrf.mxu0
  %v294 = vadd.f32 %v164, %v293
  %295 = vmatmul.f32.gmra.mxu0 %v96
  %v296 = vpop.f32.mrf.mxu0
  %v297 = vadd.f32 %v164, %v296
  %298 = vdwg.mxu0
  %299 = vmatpush.msra.mxu0 %v160
  %300 = vmatpush.msra.mxu0 %v158
  %301 = vmatpush.msra.mxu0 %v156
  %302 = vmatpush.msra.mxu0 %v154
  %303 = vmatpush.msra.mxu0 %v152
  %304 = vmatpush.msra.mxu0 %v150
  %305 = vmatpush.msra.mxu0 %v148
  %306 = vmatpush.msra.mxu0 %v146
  %307 = vmatpush.msra.mxu0 %v144
  %308 = vmatpush.msra.mxu0 %v142
  %309 = vmatpush.msra.mxu0 %v140
  %310 = vmatpush.msra.mxu0 %v138
  %311 = vmatpush.msra.mxu0 %v136
  %312 = vmatpush.msra.mxu0 %v134
  %313 = vmatpush.msra.mxu0 %v132
  %314 = vmatpush.msra.mxu0 %v130
  %315 = vmatmul.f32.gmra.mxu0 %v23
  %v316 = vpop.f32.mrf.mxu0
  %v317 = vadd.f32 %v186, %v316
  %318 = vmatmul.f32.gmra.mxu0 %v25
  %v319 = vpop.f32.mrf.mxu0
  %v320 = vadd.f32 %v189, %v319
  %321 = vmatmul.f32.gmra.mxu0 %v27
  %v322 = vpop.f32.mrf.mxu0
  %v323 = vadd.f32 %v192, %v322
  %324 = vmatmul.f32.gmra.mxu0 %v29
  %v325 = vpop.f32.mrf.mxu0
  %v326 = vadd.f32 %v195, %v325
  %327 = vmatmul.f32.gmra.mxu0 %v31
  %v328 = vpop.f32.mrf.mxu0
  %v329 = vadd.f32 %v198, %v328
  %330 = vmatmul.f32.gmra.mxu0 %v33
  %v331 = vpop.f32.mrf.mxu0
  %v332 = vadd.f32 %v201, %v331
  %333 = vmatmul.f32.gmra.mxu0 %v35
  %v334 = vpop.f32.mrf.mxu0
  %v335 = vadd.f32 %v204, %v334
  %336 = vmatmul.f32.gmra.mxu0 %v37
  %v337 = vpop.f32.mrf.mxu0
  %v338 = vadd.f32 %v207, %v337
  %339 = vmatmul.f32.gmra.mxu0 %v39
  %v340 = vpop.f32.mrf.mxu0
  %v341 = vadd.f32 %v210, %v340
  %342 = vmatmul.f32.gmra.mxu0 %v41
  %v343 = vpop.f32.mrf.mxu0
  %v344 = vadd.f32 %v213, %v343
  %345 = vmatmul.f32.gmra.mxu0 %v43
  %v346 = vpop.f32.mrf.mxu0
  %v347 = vadd.f32 %v216, %v346
  %348 = vmatmul.f32.gmra.mxu0 %v45
  %v349 = vpop.f32.mrf.mxu0
  %v350 = vadd.f32 %v219, %v349
  %351 = vmatmul.f32.gmra.mxu0 %v47
  %v352 = vpop.f32.mrf.mxu0
  %v353 = vadd.f32 %v222, %v352
  %354 = vmatmul.f32.gmra.mxu0 %v49
  %v355 = vpop.f32.mrf.mxu0
  %v356 = vadd.f32 %v225, %v355
  %357 = vmatmul.f32.gmra.mxu0 %v51
  %v358 = vpop.f32.mrf.mxu0
  %v359 = vadd.f32 %v228, %v358
  %360 = vmatmul.f32.gmra.mxu0 %v53
  %v361 = vpop.f32.mrf.mxu0
  %v362 = vadd.f32 %v231, %v361
  %363 = vmatmul.f32.gmra.mxu0 %v55
  %v364 = vpop.f32.mrf.mxu0
  %v365 = vadd.f32 %v234, %v364
  %366 = vmatmul.f32.gmra.mxu0 %v57
  %v367 = vpop.f32.mrf.mxu0
  %v368 = vadd.f32 %v237, %v367
  %369 = vmatmul.f32.gmra.mxu0 %v59
  %v370 = vpop.f32.mrf.mxu0
  %v371 = vadd.f32 %v240, %v370
  %372 = vmatmul.f32.gmra.mxu0 %v61
  %v373 = vpop.f32.mrf.mxu0
  %v374 = vadd.f32 %v243, %v373
  %375 = vmatmul.f32.gmra.mxu0 %v63
  %v376 = vpop.f32.mrf.mxu0
  %v377 = vadd.f32 %v246, %v376
  %378 = vmatmul.f32.gmra.mxu0 %v65
  %v379 = vpop.f32.mrf.mxu0
  %v380 = vadd.f32 %v249, %v379
  %381 = vmatmul.f32.gmra.mxu0 %v67
  %v382 = vpop.f32.mrf.mxu0
  %v383 = vadd.f32 %v252, %v382
  %384 = vmatmul.f32.gmra.mxu0 %v69
  %v385 = vpop.f32.mrf.mxu0
  %v386 = vadd.f32 %v255, %v385
  %387 = vmatmul.f32.gmra.mxu0 %v71
  %v388 = vpop.f32.mrf.mxu0
  %v389 = vadd.f32 %v258, %v388
  %390 = vmatmul.f32.gmra.mxu0 %v73
  %v391 = vpop.f32.mrf.mxu0
  %v392 = vadd.f32 %v261, %v391
  %393 = vmatmul.f32.gmra.mxu0 %v75
  %v394 = vpop.f32.mrf.mxu0
  %v395 = vadd.f32 %v264, %v394
  %396 = vmatmul.f32.gmra.mxu0 %v77
  %v397 = vpop.f32.mrf.mxu0
  %v398 = vadd.f32 %v267, %v397
  %399 = vmatmul.f32.gmra.mxu0 %v79
  %v400 = vpop.f32.mrf.mxu0
  %v401 = vadd.f32 %v270, %v400
  %402 = vmatmul.f32.gmra.mxu0 %v81
  %v403 = vpop.f32.mrf.mxu0
  %v404 = vadd.f32 %v273, %v403
  %405 = vmatmul.f32.gmra.mxu0 %v83
  %v406 = vpop.f32.mrf.mxu0
  %v407 = vadd.f32 %v276, %v406
  %408 = vmatmul.f32.gmra.mxu0 %v85
  %v409 = vpop.f32.mrf.mxu0
  %v410 = vadd.f32 %v279, %v409
  %411 = vmatmul.f32.gmra.mxu0 %v87
  %v412 = vpop.f32.mrf.mxu0
  %v413 = vadd.f32 %v282, %v412
  %414 = vmatmul.f32.gmra.mxu0 %v89
  %v415 = vpop.f32.mrf.mxu0
  %v416 = vadd.f32 %v285, %v415
  %417 = vmatmul.f32.gmra.mxu0 %v91
  %v418 = vpop.f32.mrf.mxu0
  %v419 = vadd.f32 %v288, %v418
  %420 = vmatmul.f32.gmra.mxu0 %v93
  %v421 = vpop.f32.mrf.mxu0
  %v422 = vadd.f32 %v291, %v421
  %423 = vmatmul.f32.gmra.mxu0 %v95
  %v424 = vpop.f32.mrf.mxu0
  %v425 = vadd.f32 %v294, %v424
  %426 = vmatmul.f32.gmra.mxu0 %v97
  %v427 = vpop.f32.mrf.mxu0
  %v428 = vadd.f32 %v297, %v427
  %429 = vdwg.mxu0
  %430 = vmatpush.msra.mxu0 %v129
  %431 = vmatpush.msra.mxu0 %v127
  %432 = vmatpush.msra.mxu0 %v125
  %433 = vmatpush.msra.mxu0 %v123
  %434 = vmatpush.msra.mxu0 %v121
  %435 = vmatpush.msra.mxu0 %v119
  %436 = vmatpush.msra.mxu0 %v117
  %437 = vmatpush.msra.mxu0 %v115
  %438 = vmatpush.msra.mxu0 %v113
  %439 = vmatpush.msra.mxu0 %v111
  %440 = vmatpush.msra.mxu0 %v109
  %441 = vmatpush.msra.mxu0 %v107
  %442 = vmatpush.msra.mxu0 %v105
  %443 = vmatpush.msra.mxu0 %v103
  %444 = vmatpush.msra.mxu0 %v101
  %445 = vmatpush.msra.mxu0 %v99
  %446 = vmatmul.f32.gmra.mxu0 %v22
  %v447 = vpop.f32.mrf.mxu0
  %v448 = vadd.f32 %v165, %v447
  %449 = vmatmul.f32.gmra.mxu0 %v24
  %v450 = vpop.f32.mrf.mxu0
  %v451 = vadd.f32 %v165, %v450
  %452 = vmatmul.f32.gmra.mxu0 %v26
  %v453 = vpop.f32.mrf.mxu0
  %v454 = vadd.f32 %v165, %v453
  %455 = vmatmul.f32.gmra.mxu0 %v28
  %v456 = vpop.f32.mrf.mxu0
  %v457 = vadd.f32 %v165, %v456
  %458 = vmatmul.f32.gmra.mxu0 %v30
  %v459 = vpop.f32.mrf.mxu0
  %v460 = vadd.f32 %v165, %v459
  %461 = vmatmul.f32.gmra.mxu0 %v32
  %v462 = vpop.f32.mrf.mxu0
  %v463 = vadd.f32 %v165, %v462
  %464 = vmatmul.f32.gmra.mxu0 %v34
  %v465 = vpop.f32.mrf.mxu0
  %v466 = vadd.f32 %v165, %v465
  %467 = vmatmul.f32.gmra.mxu0 %v36
  %v468 = vpop.f32.mrf.mxu0
  %v469 = vadd.f32 %v165, %v468
  %470 = vmatmul.f32.gmra.mxu0 %v38
  %v471 = vpop.f32.mrf.mxu0
  %v472 = vadd.f32 %v165, %v471
  %473 = vmatmul.f32.gmra.mxu0 %v40
  %v474 = vpop.f32.mrf.mxu0
  %v475 = vadd.f32 %v165, %v474
  %476 = vmatmul.f32.gmra.mxu0 %v42
  %v477 = vpop.f32.mrf.mxu0
  %v478 = vadd.f32 %v165, %v477
  %479 = vmatmul.f32.gmra.mxu0 %v44
  %v480 = vpop.f32.mrf.mxu0
  %v481 = vadd.f32 %v165, %v480
  %482 = vmatmul.f32.gmra.mxu0 %v46
  %v483 = vpop.f32.mrf.mxu0
  %v484 = vadd.f32 %v165, %v483
  %485 = vmatmul.f32.gmra.mxu0 %v48
  %v486 = vpop.f32.mrf.mxu0
  %v487 = vadd.f32 %v165, %v486
  %488 = vmatmul.f32.gmra.mxu0 %v50
  %v489 = vpop.f32.mrf.mxu0
  %v490 = vadd.f32 %v165, %v489
  %491 = vmatmul.f32.gmra.mxu0 %v52
  %v492 = vpop.f32.mrf.mxu0
  %v493 = vadd.f32 %v165, %v492
  %494 = vmatmul.f32.gmra.mxu0 %v54
  %v495 = vpop.f32.mrf.mxu0
  %v496 = vadd.f32 %v165, %v495
  %497 = vmatmul.f32.gmra.mxu0 %v56
  %v498 = vpop.f32.mrf.mxu0
  %v499 = vadd.f32 %v165, %v498
  %500 = vmatmul.f32.gmra.mxu0 %v58
  %v501 = vpop.f32.mrf.mxu0
  %v502 = vadd.f32 %v165, %v501
  %503 = vmatmul.f32.gmra.mxu0 %v60
  %v504 = vpop.f32.mrf.mxu0
  %v505 = vadd.f32 %v165, %v504
  %506 = vmatmul.f32.gmra.mxu0 %v62
  %v507 = vpop.f32.mrf.mxu0
  %v508 = vadd.f32 %v165, %v507
  %509 = vmatmul.f32.gmra.mxu0 %v64
  %v510 = vpop.f32.mrf.mxu0
  %v511 = vadd.f32 %v165, %v510
  %512 = vmatmul.f32.gmra.mxu0 %v66
  %v513 = vpop.f32.mrf.mxu0
  %v514 = vadd.f32 %v165, %v513
  %515 = vmatmul.f32.gmra.mxu0 %v68
  %v516 = vpop.f32.mrf.mxu0
  %v517 = vadd.f32 %v165, %v516
  %518 = vmatmul.f32.gmra.mxu0 %v70
  %v519 = vpop.f32.mrf.mxu0
  %v520 = vadd.f32 %v165, %v519
  %521 = vmatmul.f32.gmra.mxu0 %v72
  %v522 = vpop.f32.mrf.mxu0
  %v523 = vadd.f32 %v165, %v522
  %524 = vmatmul.f32.gmra.mxu0 %v74
  %v525 = vpop.f32.mrf.mxu0
  %v526 = vadd.f32 %v165, %v525
  %527 = vmatmul.f32.gmra.mxu0 %v76
  %v528 = vpop.f32.mrf.mxu0
  %v529 = vadd.f32 %v165, %v528
  %530 = vmatmul.f32.gmra.mxu0 %v78
  %v531 = vpop.f32.mrf.mxu0
  %v532 = vadd.f32 %v165, %v531
  %533 = vmatmul.f32.gmra.mxu0 %v80
  %v534 = vpop.f32.mrf.mxu0
  %v535 = vadd.f32 %v165, %v534
  %536 = vmatmul.f32.gmra.mxu0 %v82
  %v537 = vpop.f32.mrf.mxu0
  %v538 = vadd.f32 %v165, %v537
  %539 = vmatmul.f32.gmra.mxu0 %v84
  %v540 = vpop.f32.mrf.mxu0
  %v541 = vadd.f32 %v165, %v540
  %542 = vmatmul.f32.gmra.mxu0 %v86
  %v543 = vpop.f32.mrf.mxu0
  %v544 = vadd.f32 %v165, %v543
  %545 = vmatmul.f32.gmra.mxu0 %v88
  %v546 = vpop.f32.mrf.mxu0
  %v547 = vadd.f32 %v165, %v546
  %548 = vmatmul.f32.gmra.mxu0 %v90
  %v549 = vpop.f32.mrf.mxu0
  %v550 = vadd.f32 %v165, %v549
  %551 = vmatmul.f32.gmra.mxu0 %v92
  %v552 = vpop.f32.mrf.mxu0
  %v553 = vadd.f32 %v165, %v552
  %554 = vmatmul.f32.gmra.mxu0 %v94
  %v555 = vpop.f32.mrf.mxu0
  %v556 = vadd.f32 %v165, %v555
  %557 = vmatmul.f32.gmra.mxu0 %v96
  %v558 = vpop.f32.mrf.mxu0
  %v559 = vadd.f32 %v165, %v558
  %560 = vdwg.mxu0
  %561 = vmatpush.msra.mxu0 %v161
  %562 = vmatpush.msra.mxu0 %v159
  %563 = vmatpush.msra.mxu0 %v157
  %564 = vmatpush.msra.mxu0 %v155
  %565 = vmatpush.msra.mxu0 %v153
  %566 = vmatpush.msra.mxu0 %v151
  %567 = vmatpush.msra.mxu0 %v149
  %568 = vmatpush.msra.mxu0 %v147
  %569 = vmatpush.msra.mxu0 %v145
  %570 = vmatpush.msra.mxu0 %v143
  %571 = vmatpush.msra.mxu0 %v141
  %572 = vmatpush.msra.mxu0 %v139
  %573 = vmatpush.msra.mxu0 %v137
  %574 = vmatpush.msra.mxu0 %v135
  %575 = vmatpush.msra.mxu0 %v133
  %576 = vmatpush.msra.mxu0 %v131
  %577 = vmatmul.f32.gmra.mxu0 %v23
  %v578 = vpop.f32.mrf.mxu0
  %v579 = vadd.f32 %v448, %v578
  %580 = vmatmul.f32.gmra.mxu0 %v25
  %v581 = vpop.f32.mrf.mxu0
  %v582 = vadd.f32 %v451, %v581
  %583 = vmatmul.f32.gmra.mxu0 %v27
  %v584 = vpop.f32.mrf.mxu0
  %v585 = vadd.f32 %v454, %v584
  %586 = vmatmul.f32.gmra.mxu0 %v29
  %v587 = vpop.f32.mrf.mxu0
  %v588 = vadd.f32 %v457, %v587
  %589 = vmatmul.f32.gmra.mxu0 %v31
  %v590 = vpop.f32.mrf.mxu0
  %v591 = vadd.f32 %v460, %v590
  %592 = vmatmul.f32.gmra.mxu0 %v33
  %v593 = vpop.f32.mrf.mxu0
  %v594 = vadd.f32 %v463, %v593
  %595 = vmatmul.f32.gmra.mxu0 %v35
  %v596 = vpop.f32.mrf.mxu0
  %v597 = vadd.f32 %v466, %v596
  %598 = vmatmul.f32.gmra.mxu0 %v37
  %v599 = vpop.f32.mrf.mxu0
  %v600 = vadd.f32 %v469, %v599
  %601 = vmatmul.f32.gmra.mxu0 %v39
  %v602 = vpop.f32.mrf.mxu0
  %v603 = vadd.f32 %v472, %v602
  %604 = vmatmul.f32.gmra.mxu0 %v41
  %v605 = vpop.f32.mrf.mxu0
  %v606 = vadd.f32 %v475, %v605
  %607 = vmatmul.f32.gmra.mxu0 %v43
  %v608 = vpop.f32.mrf.mxu0
  %v609 = vadd.f32 %v478, %v608
  %610 = vmatmul.f32.gmra.mxu0 %v45
  %v611 = vpop.f32.mrf.mxu0
  %v612 = vadd.f32 %v481, %v611
  %613 = vmatmul.f32.gmra.mxu0 %v47
  %v614 = vpop.f32.mrf.mxu0
  %v615 = vadd.f32 %v484, %v614
  %616 = vmatmul.f32.gmra.mxu0 %v49
  %v617 = vpop.f32.mrf.mxu0
  %v618 = vadd.f32 %v487, %v617
  %619 = vmatmul.f32.gmra.mxu0 %v51
  %v620 = vpop.f32.mrf.mxu0
  %v621 = vadd.f32 %v490, %v620
  %622 = vmatmul.f32.gmra.mxu0 %v53
  %v623 = vpop.f32.mrf.mxu0
  %v624 = vadd.f32 %v493, %v623
  %625 = vmatmul.f32.gmra.mxu0 %v55
  %v626 = vpop.f32.mrf.mxu0
  %v627 = vadd.f32 %v496, %v626
  %628 = vmatmul.f32.gmra.mxu0 %v57
  %v629 = vpop.f32.mrf.mxu0
  %v630 = vadd.f32 %v499, %v629
  %631 = vmatmul.f32.gmra.mxu0 %v59
  %v632 = vpop.f32.mrf.mxu0
  %v633 = vadd.f32 %v502, %v632
  %634 = vmatmul.f32.gmra.mxu0 %v61
  %v635 = vpop.f32.mrf.mxu0
  %v636 = vadd.f32 %v505, %v635
  %637 = vmatmul.f32.gmra.mxu0 %v63
  %v638 = vpop.f32.mrf.mxu0
  %v639 = vadd.f32 %v508, %v638
  %640 = vmatmul.f32.gmra.mxu0 %v65
  %v641 = vpop.f32.mrf.mxu0
  %v642 = vadd.f32 %v511, %v641
  %643 = vmatmul.f32.gmra.mxu0 %v67
  %v644 = vpop.f32.mrf.mxu0
  %v645 = vadd.f32 %v514, %v644
  %646 = vmatmul.f32.gmra.mxu0 %v69
  %v647 = vpop.f32.mrf.mxu0
  %v648 = vadd.f32 %v517, %v647
  %649 = vmatmul.f32.gmra.mxu0 %v71
  %v650 = vpop.f32.mrf.mxu0
  %v651 = vadd.f32 %v520, %v650
  %652 = vmatmul.f32.gmra.mxu0 %v73
  %v653 = vpop.f32.mrf.mxu0
  %v654 = vadd.f32 %v523, %v653
  %655 = vmatmul.f32.gmra.mxu0 %v75
  %v656 = vpop.f32.mrf.mxu0
  %v657 = vadd.f32 %v526, %v656
  %658 = vmatmul.f32.gmra.mxu0 %v77
  %v659 = vpop.f32.mrf.mxu0
  %v660 = vadd.f32 %v529, %v659
  %661 = vmatmul.f32.gmra.mxu0 %v79
  %v662 = vpop.f32.mrf.mxu0
  %v663 = vadd.f32 %v532, %v662
  %664 = vmatmul.f32.gmra.mxu0 %v81
  %v665 = vpop.f32.mrf.mxu0
  %v666 = vadd.f32 %v535, %v665
  %667 = vmatmul.f32.gmra.mxu0 %v83
  %v668 = vpop.f32.mrf.mxu0
  %v669 = vadd.f32 %v538, %v668
  %670 = vmatmul.f32.gmra.mxu0 %v85
  %v671 = vpop.f32.mrf.mxu0
  %v672 = vadd.f32 %v541, %v671
  %673 = vmatmul.f32.gmra.mxu0 %v87
  %v674 = vpop.f32.mrf.mxu0
  %v675 = vadd.f32 %v544, %v674
  %676 = vmatmul.f32.gmra.mxu0 %v89
  %v677 = vpop.f32.mrf.mxu0
  %v678 = vadd.f32 %v547, %v677
  %679 = vmatmul.f32.gmra.mxu0 %v91
  %v680 = vpop.f32.mrf.mxu0
  %v681 = vadd.f32 %v550, %v680
  %682 = vmatmul.f32.gmra.mxu0 %v93
  %v683 = vpop.f32.mrf.mxu0
  %v684 = vadd.f32 %v553, %v683
  %685 = vmatmul.f32.gmra.mxu0 %v95
  %v686 = vpop.f32.mrf.mxu0
  %v687 = vadd.f32 %v556, %v686
  %688 = vmatmul.f32.gmra.mxu0 %v97
  %v689 = vpop.f32.mrf.mxu0
  %v690 = vadd.f32 %v559, %v689
  %691 = vdwg.mxu0
  %v692 = vtanh.pop %v317
  %v693 = vtanh.pop %v320
  %v694 = vtanh.pop %v323
  %v695 = vtanh.pop %v326
  %v696 = vtanh.pop %v329
  %v697 = vtanh.pop %v332
  %v698 = vtanh.pop %v335
  %v699 = vtanh.pop %v338
  %v700 = vtanh.pop %v341
  %v701 = vtanh.pop %v344
  %v702 = vtanh.pop %v347
  %v703 = vtanh.pop %v350
  %v704 = vtanh.pop %v353
  %v705 = vtanh.pop %v356
  %v706 = vtanh.pop %v359
  %v707 = vtanh.pop %v362
  %v708 = vtanh.pop %v365
  %v709 = vtanh.pop %v368
  %v710 = vtanh.pop %v371
  %v711 = vtanh.pop %v374
  %v712 = vtanh.pop %v377
  %v713 = vtanh.pop %v380
  %v714 = vtanh.pop %v383
  %v715 = vtanh.pop %v386
  %v716 = vtanh.pop %v389
  %v717 = vtanh.pop %v392
  %v718 = vtanh.pop %v395
  %v719 = vtanh.pop %v398
  %v720 = vtanh.pop %v401
  %v721 = vtanh.pop %v404
  %v722 = vtanh.pop %v407
  %v723 = vtanh.pop %v410
  %v724 = vtanh.pop %v413
  %v725 = vtanh.pop %v416
  %v726 = vtanh.pop %v419
  %v727 = vtanh.pop %v422
  %v728 = vtanh.pop %v425
  %v729 = vtanh.pop %v428
  %v730 = vxor.u32 %v579, 2147483648
  %v731 = vxor.u32 %v582, 2147483648
  %v732 = vxor.u32 %v585, 2147483648
  %v733 = vxor.u32 %v588, 2147483648
  %v734 = vxor.u32 %v591, 2147483648
  %v735 = vxor.u32 %v594, 2147483648
  %v736 = vxor.u32 %v597, 2147483648
  %v737 = vxor.u32 %v600, 2147483648
  %v738 = vxor.u32 %v603, 2147483648
  %v739 = vxor.u32 %v606, 2147483648
  %v740 = vxor.u32 %v609, 2147483648
  %v741 = vxor.u32 %v612, 2147483648
  %v742 = vxor.u32 %v615, 2147483648
  %v743 = vxor.u32 %v618, 2147483648
  %v744 = vxor.u32 %v621, 2147483648
  %v745 = vxor.u32 %v624, 2147483648
  %v746 = vxor.u32 %v627, 2147483648
  %v747 = vxor.u32 %v630, 2147483648
  %v748 = vxor.u32 %v633, 2147483648
  %v749 = vxor.u32 %v636, 2147483648
  %v750 = vxor.u32 %v639, 2147483648
  %v751 = vxor.u32 %v642, 2147483648
  %v752 = vxor.u32 %v645, 2147483648
  %v753 = vxor.u32 %v648, 2147483648
  %v754 = vxor.u32 %v651, 2147483648
  %v755 = vxor.u32 %v654, 2147483648
  %v756 = vxor.u32 %v657, 2147483648
  %v757 = vxor.u32 %v660, 2147483648
  %v758 = vxor.u32 %v663, 2147483648
  %v759 = vxor.u32 %v666, 2147483648
  %v760 = vxor.u32 %v669, 2147483648
  %v761 = vxor.u32 %v672, 2147483648
  %v762 = vxor.u32 %v675, 2147483648
  %v763 = vxor.u32 %v678, 2147483648
  %v764 = vxor.u32 %v681, 2147483648
  %v765 = vxor.u32 %v684, 2147483648
  %v766 = vxor.u32 %v687, 2147483648
  %v767 = vxor.u32 %v690, 2147483648
  %v768 = vmul.f32 %v730, 1.442695
  %v769 = vpow.pop %v768
  %v770 = vmul.f32 %v731, 1.442695
  %v771 = vpow.pop %v770
  %v772 = vmul.f32 %v732, 1.442695
  %v773 = vpow.pop %v772
  %v774 = vmul.f32 %v733, 1.442695
  %v775 = vpow.pop %v774
  %v776 = vmul.f32 %v734, 1.442695
  %v777 = vpow.pop %v776
  %v778 = vmul.f32 %v735, 1.442695
  %v779 = vpow.pop %v778
  %v780 = vmul.f32 %v736, 1.442695
  %v781 = vpow.pop %v780
  %v782 = vmul.f32 %v737, 1.442695
  %v783 = vpow.pop %v782
  %v784 = vmul.f32 %v738, 1.442695
  %v785 = vpow.pop %v784
  %v786 = vmul.f32 %v739, 1.442695
  %v787 = vpow.pop %v786
  %v788 = vmul.f32 %v740, 1.442695
  %v789 = vpow.pop %v788
  %v790 = vmul.f32 %v741, 1.442695
  %v791 = vpow.pop %v790
  %v792 = vmul.f32 %v742, 1.442695
  %v793 = vpow.pop %v792
  %v794 = vmul.f32 %v743, 1.442695
  %v795 = vpow.pop %v794
  %v796 = vmul.f32 %v744, 1.442695
  %v797 = vpow.pop %v796
  %v798 = vmul.f32 %v745, 1.442695
  %v799 = vpow.pop %v798
  %v800 = vmul.f32 %v746, 1.442695
  %v801 = vpow.pop %v800
  %v802 = vmul.f32 %v747, 1.442695
  %v803 = vpow.pop %v802
  %v804 = vmul.f32 %v748, 1.442695
  %v805 = vpow.pop %v804
  %v806 = vmul.f32 %v749, 1.442695
  %v807 = vpow.pop %v806
  %v808 = vmul.f32 %v750, 1.442695
  %v809 = vpow.pop %v808
  %v810 = vmul.f32 %v751, 1.442695
  %v811 = vpow.pop %v810
  %v812 = vmul.f32 %v752, 1.442695
  %v813 = vpow.pop %v812
  %v814 = vmul.f32 %v753, 1.442695
  %v815 = vpow.pop %v814
  %v816 = vmul.f32 %v754, 1.442695
  %v817 = vpow.pop %v816
  %v818 = vmul.f32 %v755, 1.442695
  %v819 = vpow.pop %v818
  %v820 = vmul.f32 %v756, 1.442695
  %v821 = vpow.pop %v820
  %v822 = vmul.f32 %v757, 1.442695
  %v823 = vpow.pop %v822
  %v824 = vmul.f32 %v758, 1.442695
  %v825 = vpow.pop %v824
  %v826 = vmul.f32 %v759, 1.442695
  %v827 = vpow.pop %v826
  %v828 = vmul.f32 %v760, 1.442695
  %v829 = vpow.pop %v828
  %v830 = vmul.f32 %v761, 1.442695
  %v831 = vpow.pop %v830
  %v832 = vmul.f32 %v762, 1.442695
  %v833 = vpow.pop %v832
  %v834 = vmul.f32 %v763, 1.442695
  %v835 = vpow.pop %v834
  %v836 = vmul.f32 %v764, 1.442695
  %v837 = vpow.pop %v836
  %v838 = vmul.f32 %v765, 1.442695
  %v839 = vpow.pop %v838
  %v840 = vmul.f32 %v766, 1.442695
  %v841 = vpow.pop %v840
  %v842 = vmul.f32 %v767, 1.442695
  %v843 = vpow.pop %v842
  %v844 = vadd.f32 %v769, 1.0
  %v845 = vadd.f32 %v771, 1.0
  %v846 = vadd.f32 %v773, 1.0
  %v847 = vadd.f32 %v775, 1.0
  %v848 = vadd.f32 %v777, 1.0
  %v849 = vadd.f32 %v779, 1.0
  %v850 = vadd.f32 %v781, 1.0
  %v851 = vadd.f32 %v783, 1.0
  %v852 = vadd.f32 %v785, 1.0
  %v853 = vadd.f32 %v787, 1.0
  %v854 = vadd.f32 %v789, 1.0
  %v855 = vadd.f32 %v791, 1.0
  %v856 = vadd.f32 %v793, 1.0
  %v857 = vadd.f32 %v795, 1.0
  %v858 = vadd.f32 %v797, 1.0
  %v859 = vadd.f32 %v799, 1.0
  %v860 = vadd.f32 %v801, 1.0
  %v861 = vadd.f32 %v803, 1.0
  %v862 = vadd.f32 %v805, 1.0
  %v863 = vadd.f32 %v807, 1.0
  %v864 = vadd.f32 %v809, 1.0
  %v865 = vadd.f32 %v811, 1.0
  %v866 = vadd.f32 %v813, 1.0
  %v867 = vadd.f32 %v815, 1.0
  %v868 = vadd.f32 %v817, 1.0
  %v869 = vadd.f32 %v819, 1.0
  %v870 = vadd.f32 %v821, 1.0
  %v871 = vadd.f32 %v823, 1.0
  %v872 = vadd.f32 %v825, 1.0
  %v873 = vadd.f32 %v827, 1.0
  %v874 = vadd.f32 %v829, 1.0
  %v875 = vadd.f32 %v831, 1.0
  %v876 = vadd.f32 %v833, 1.0
  %v877 = vadd.f32 %v835, 1.0
  %v878 = vadd.f32 %v837, 1.0
  %v879 = vadd.f32 %v839, 1.0
  %v880 = vadd.f32 %v841, 1.0
  %v881 = vadd.f32 %v843, 1.0
  %v882 = vrcp.pop %v844
  %v883 = vmul.f32 %v844, %v882
  %v884 = vsub.f32 1.0, %v883
  %v885 = vmul.f32 %v882, %v884
  %v886 = vadd.f32 %v882, %v885
  %vm887 = vweird.f32 %v844
  %vm888 = vweird.f32 %v882
  %vm889 = vmor %vm887, %vm888
  %v890 = vsel %vm889, %v882, %v886
  %v891 = vand.u32 2147483647, %v844
  %vm892 = vcmp.eq.f32.partialorder %v891, 8.507059e+37
  %v893 = vand.u32 %v844, 2147483648
  %v894 = vor.u32 1.1754944e-38, %v893
  %v895 = vsel %vm892, %v894, %v890
  %v896 = vmul.f32 1.0, %v895
  %v897 = vrcp.pop %v845
  %v898 = vmul.f32 %v845, %v897
  %v899 = vsub.f32 1.0, %v898
  %v900 = vmul.f32 %v897, %v899
  %v901 = vadd.f32 %v897, %v900
  %vm902 = vweird.f32 %v845
  %vm903 = vweird.f32 %v897
  %vm904 = vmor %vm902, %vm903
  %v905 = vsel %vm904, %v897, %v901
  %v906 = vand.u32 2147483647, %v845
  %vm907 = vcmp.eq.f32.partialorder %v906, 8.507059e+37
  %v908 = vand.u32 %v845, 2147483648
  %v909 = vor.u32 1.1754944e-38, %v908
  %v910 = vsel %vm907, %v909, %v905
  %v911 = vmul.f32 1.0, %v910
  %v912 = vrcp.pop %v846
  %v913 = vmul.f32 %v846, %v912
  %v914 = vsub.f32 1.0, %v913
  %v915 = vmul.f32 %v912, %v914
  %v916 = vadd.f32 %v912, %v915
  %vm917 = vweird.f32 %v846
  %vm918 = vweird.f32 %v912
  %vm919 = vmor %vm917, %vm918
  %v920 = vsel %vm919, %v912, %v916
  %v921 = vand.u32 2147483647, %v846
  %vm922 = vcmp.eq.f32.partialorder %v921, 8.507059e+37
  %v923 = vand.u32 %v846, 2147483648
  %v924 = vor.u32 1.1754944e-38, %v923
  %v925 = vsel %vm922, %v924, %v920
  %v926 = vmul.f32 1.0, %v925
  %v927 = vrcp.pop %v847
  %v928 = vmul.f32 %v847, %v927
  %v929 = vsub.f32 1.0, %v928
  %v930 = vmul.f32 %v927, %v929
  %v931 = vadd.f32 %v927, %v930
  %vm932 = vweird.f32 %v847
  %vm933 = vweird.f32 %v927
  %vm934 = vmor %vm932, %vm933
  %v935 = vsel %vm934, %v927, %v931
  %v936 = vand.u32 2147483647, %v847
  %vm937 = vcmp.eq.f32.partialorder %v936, 8.507059e+37
  %v938 = vand.u32 %v847, 2147483648
  %v939 = vor.u32 1.1754944e-38, %v938
  %v940 = vsel %vm937, %v939, %v935
  %v941 = vmul.f32 1.0, %v940
  %v942 = vrcp.pop %v848
  %v943 = vmul.f32 %v848, %v942
  %v944 = vsub.f32 1.0, %v943
  %v945 = vmul.f32 %v942, %v944
  %v946 = vadd.f32 %v942, %v945
  %vm947 = vweird.f32 %v848
  %vm948 = vweird.f32 %v942
  %vm949 = vmor %vm947, %vm948
  %v950 = vsel %vm949, %v942, %v946
  %v951 = vand.u32 2147483647, %v848
  %vm952 = vcmp.eq.f32.partialorder %v951, 8.507059e+37
  %v953 = vand.u32 %v848, 2147483648
  %v954 = vor.u32 1.1754944e-38, %v953
  %v955 = vsel %vm952, %v954, %v950
  %v956 = vmul.f32 1.0, %v955
  %v957 = vrcp.pop %v849
  %v958 = vmul.f32 %v849, %v957
  %v959 = vsub.f32 1.0, %v958
  %v960 = vmul.f32 %v957, %v959
  %v961 = vadd.f32 %v957, %v960
  %vm962 = vweird.f32 %v849
  %vm963 = vweird.f32 %v957
  %vm964 = vmor %vm962, %vm963
  %v965 = vsel %vm964, %v957, %v961
  %v966 = vand.u32 2147483647, %v849
  %vm967 = vcmp.eq.f32.partialorder %v966, 8.507059e+37
  %v968 = vand.u32 %v849, 2147483648
  %v969 = vor.u32 1.1754944e-38, %v968
  %v970 = vsel %vm967, %v969, %v965
  %v971 = vmul.f32 1.0, %v970
  %v972 = vrcp.pop %v850
  %v973 = vmul.f32 %v850, %v972
  %v974 = vsub.f32 1.0, %v973
  %v975 = vmul.f32 %v972, %v974
  %v976 = vadd.f32 %v972, %v975
  %vm977 = vweird.f32 %v850
  %vm978 = vweird.f32 %v972
  %vm979 = vmor %vm977, %vm978
  %v980 = vsel %vm979, %v972, %v976
  %v981 = vand.u32 2147483647, %v850
  %vm982 = vcmp.eq.f32.partialorder %v981, 8.507059e+37
  %v983 = vand.u32 %v850, 2147483648
  %v984 = vor.u32 1.1754944e-38, %v983
  %v985 = vsel %vm982, %v984, %v980
  %v986 = vmul.f32 1.0, %v985
  %v987 = vrcp.pop %v851
  %v988 = vmul.f32 %v851, %v987
  %v989 = vsub.f32 1.0, %v988
  %v990 = vmul.f32 %v987, %v989
  %v991 = vadd.f32 %v987, %v990
  %vm992 = vweird.f32 %v851
  %vm993 = vweird.f32 %v987
  %vm994 = vmor %vm992, %vm993
  %v995 = vsel %vm994, %v987, %v991
  %v996 = vand.u32 2147483647, %v851
  %vm997 = vcmp.eq.f32.partialorder %v996, 8.507059e+37
  %v998 = vand.u32 %v851, 2147483648
  %v999 = vor.u32 1.1754944e-38, %v998
  %v1000 = vsel %vm997, %v999, %v995
  %v1001 = vmul.f32 1.0, %v1000
  %v1002 = vrcp.pop %v852
  %v1003 = vmul.f32 %v852, %v1002
  %v1004 = vsub.f32 1.0, %v1003
  %v1005 = vmul.f32 %v1002, %v1004
  %v1006 = vadd.f32 %v1002, %v1005
  %vm1007 = vweird.f32 %v852
  %vm1008 = vweird.f32 %v1002
  %vm1009 = vmor %vm1007, %vm1008
  %v1010 = vsel %vm1009, %v1002, %v1006
  %v1011 = vand.u32 2147483647, %v852
  %vm1012 = vcmp.eq.f32.partialorder %v1011, 8.507059e+37
  %v1013 = vand.u32 %v852, 2147483648
  %v1014 = vor.u32 1.1754944e-38, %v1013
  %v1015 = vsel %vm1012, %v1014, %v1010
  %v1016 = vmul.f32 1.0, %v1015
  %v1017 = vrcp.pop %v853
  %v1018 = vmul.f32 %v853, %v1017
  %v1019 = vsub.f32 1.0, %v1018
  %v1020 = vmul.f32 %v1017, %v1019
  %v1021 = vadd.f32 %v1017, %v1020
  %vm1022 = vweird.f32 %v853
  %vm1023 = vweird.f32 %v1017
  %vm1024 = vmor %vm1022, %vm1023
  %v1025 = vsel %vm1024, %v1017, %v1021
  %v1026 = vand.u32 2147483647, %v853
  %vm1027 = vcmp.eq.f32.partialorder %v1026, 8.507059e+37
  %v1028 = vand.u32 %v853, 2147483648
  %v1029 = vor.u32 1.1754944e-38, %v1028
  %v1030 = vsel %vm1027, %v1029, %v1025
  %v1031 = vmul.f32 1.0, %v1030
  %v1032 = vrcp.pop %v854
  %v1033 = vmul.f32 %v854, %v1032
  %v1034 = vsub.f32 1.0, %v1033
  %v1035 = vmul.f32 %v1032, %v1034
  %v1036 = vadd.f32 %v1032, %v1035
  %vm1037 = vweird.f32 %v854
  %vm1038 = vweird.f32 %v1032
  %vm1039 = vmor %vm1037, %vm1038
  %v1040 = vsel %vm1039, %v1032, %v1036
  %v1041 = vand.u32 2147483647, %v854
  %vm1042 = vcmp.eq.f32.partialorder %v1041, 8.507059e+37
  %v1043 = vand.u32 %v854, 2147483648
  %v1044 = vor.u32 1.1754944e-38, %v1043
  %v1045 = vsel %vm1042, %v1044, %v1040
  %v1046 = vmul.f32 1.0, %v1045
  %v1047 = vrcp.pop %v855
  %v1048 = vmul.f32 %v855, %v1047
  %v1049 = vsub.f32 1.0, %v1048
  %v1050 = vmul.f32 %v1047, %v1049
  %v1051 = vadd.f32 %v1047, %v1050
  %vm1052 = vweird.f32 %v855
  %vm1053 = vweird.f32 %v1047
  %vm1054 = vmor %vm1052, %vm1053
  %v1055 = vsel %vm1054, %v1047, %v1051
  %v1056 = vand.u32 2147483647, %v855
  %vm1057 = vcmp.eq.f32.partialorder %v1056, 8.507059e+37
  %v1058 = vand.u32 %v855, 2147483648
  %v1059 = vor.u32 1.1754944e-38, %v1058
  %v1060 = vsel %vm1057, %v1059, %v1055
  %v1061 = vmul.f32 1.0, %v1060
  %v1062 = vrcp.pop %v856
  %v1063 = vmul.f32 %v856, %v1062
  %v1064 = vsub.f32 1.0, %v1063
  %v1065 = vmul.f32 %v1062, %v1064
  %v1066 = vadd.f32 %v1062, %v1065
  %vm1067 = vweird.f32 %v856
  %vm1068 = vweird.f32 %v1062
  %vm1069 = vmor %vm1067, %vm1068
  %v1070 = vsel %vm1069, %v1062, %v1066
  %v1071 = vand.u32 2147483647, %v856
  %vm1072 = vcmp.eq.f32.partialorder %v1071, 8.507059e+37
  %v1073 = vand.u32 %v856, 2147483648
  %v1074 = vor.u32 1.1754944e-38, %v1073
  %v1075 = vsel %vm1072, %v1074, %v1070
  %v1076 = vmul.f32 1.0, %v1075
  %v1077 = vrcp.pop %v857
  %v1078 = vmul.f32 %v857, %v1077
  %v1079 = vsub.f32 1.0, %v1078
  %v1080 = vmul.f32 %v1077, %v1079
  %v1081 = vadd.f32 %v1077, %v1080
  %vm1082 = vweird.f32 %v857
  %vm1083 = vweird.f32 %v1077
  %vm1084 = vmor %vm1082, %vm1083
  %v1085 = vsel %vm1084, %v1077, %v1081
  %v1086 = vand.u32 2147483647, %v857
  %vm1087 = vcmp.eq.f32.partialorder %v1086, 8.507059e+37
  %v1088 = vand.u32 %v857, 2147483648
  %v1089 = vor.u32 1.1754944e-38, %v1088
  %v1090 = vsel %vm1087, %v1089, %v1085
  %v1091 = vmul.f32 1.0, %v1090
  %v1092 = vrcp.pop %v858
  %v1093 = vmul.f32 %v858, %v1092
  %v1094 = vsub.f32 1.0, %v1093
  %v1095 = vmul.f32 %v1092, %v1094
  %v1096 = vadd.f32 %v1092, %v1095
  %vm1097 = vweird.f32 %v858
  %vm1098 = vweird.f32 %v1092
  %vm1099 = vmor %vm1097, %vm1098
  %v1100 = vsel %vm1099, %v1092, %v1096
  %v1101 = vand.u32 2147483647, %v858
  %vm1102 = vcmp.eq.f32.partialorder %v1101, 8.507059e+37
  %v1103 = vand.u32 %v858, 2147483648
  %v1104 = vor.u32 1.1754944e-38, %v1103
  %v1105 = vsel %vm1102, %v1104, %v1100
  %v1106 = vmul.f32 1.0, %v1105
  %v1107 = vrcp.pop %v859
  %v1108 = vmul.f32 %v859, %v1107
  %v1109 = vsub.f32 1.0, %v1108
  %v1110 = vmul.f32 %v1107, %v1109
  %v1111 = vadd.f32 %v1107, %v1110
  %vm1112 = vweird.f32 %v859
  %vm1113 = vweird.f32 %v1107
  %vm1114 = vmor %vm1112, %vm1113
  %v1115 = vsel %vm1114, %v1107, %v1111
  %v1116 = vand.u32 2147483647, %v859
  %vm1117 = vcmp.eq.f32.partialorder %v1116, 8.507059e+37
  %v1118 = vand.u32 %v859, 2147483648
  %v1119 = vor.u32 1.1754944e-38, %v1118
  %v1120 = vsel %vm1117, %v1119, %v1115
  %v1121 = vmul.f32 1.0, %v1120
  %v1122 = vrcp.pop %v860
  %v1123 = vmul.f32 %v860, %v1122
  %v1124 = vsub.f32 1.0, %v1123
  %v1125 = vmul.f32 %v1122, %v1124
  %v1126 = vadd.f32 %v1122, %v1125
  %vm1127 = vweird.f32 %v860
  %vm1128 = vweird.f32 %v1122
  %vm1129 = vmor %vm1127, %vm1128
  %v1130 = vsel %vm1129, %v1122, %v1126
  %v1131 = vand.u32 2147483647, %v860
  %vm1132 = vcmp.eq.f32.partialorder %v1131, 8.507059e+37
  %v1133 = vand.u32 %v860, 2147483648
  %v1134 = vor.u32 1.1754944e-38, %v1133
  %v1135 = vsel %vm1132, %v1134, %v1130
  %v1136 = vmul.f32 1.0, %v1135
  %v1137 = vrcp.pop %v861
  %v1138 = vmul.f32 %v861, %v1137
  %v1139 = vsub.f32 1.0, %v1138
  %v1140 = vmul.f32 %v1137, %v1139
  %v1141 = vadd.f32 %v1137, %v1140
  %vm1142 = vweird.f32 %v861
  %vm1143 = vweird.f32 %v1137
  %vm1144 = vmor %vm1142, %vm1143
  %v1145 = vsel %vm1144, %v1137, %v1141
  %v1146 = vand.u32 2147483647, %v861
  %vm1147 = vcmp.eq.f32.partialorder %v1146, 8.507059e+37
  %v1148 = vand.u32 %v861, 2147483648
  %v1149 = vor.u32 1.1754944e-38, %v1148
  %v1150 = vsel %vm1147, %v1149, %v1145
  %v1151 = vmul.f32 1.0, %v1150
  %v1152 = vrcp.pop %v862
  %v1153 = vmul.f32 %v862, %v1152
  %v1154 = vsub.f32 1.0, %v1153
  %v1155 = vmul.f32 %v1152, %v1154
  %v1156 = vadd.f32 %v1152, %v1155
  %vm1157 = vweird.f32 %v862
  %vm1158 = vweird.f32 %v1152
  %vm1159 = vmor %vm1157, %vm1158
  %v1160 = vsel %vm1159, %v1152, %v1156
  %v1161 = vand.u32 2147483647, %v862
  %vm1162 = vcmp.eq.f32.partialorder %v1161, 8.507059e+37
  %v1163 = vand.u32 %v862, 2147483648
  %v1164 = vor.u32 1.1754944e-38, %v1163
  %v1165 = vsel %vm1162, %v1164, %v1160
  %v1166 = vmul.f32 1.0, %v1165
  %v1167 = vrcp.pop %v863
  %v1168 = vmul.f32 %v863, %v1167
  %v1169 = vsub.f32 1.0, %v1168
  %v1170 = vmul.f32 %v1167, %v1169
  %v1171 = vadd.f32 %v1167, %v1170
  %vm1172 = vweird.f32 %v863
  %vm1173 = vweird.f32 %v1167
  %vm1174 = vmor %vm1172, %vm1173
  %v1175 = vsel %vm1174, %v1167, %v1171
  %v1176 = vand.u32 2147483647, %v863
  %vm1177 = vcmp.eq.f32.partialorder %v1176, 8.507059e+37
  %v1178 = vand.u32 %v863, 2147483648
  %v1179 = vor.u32 1.1754944e-38, %v1178
  %v1180 = vsel %vm1177, %v1179, %v1175
  %v1181 = vmul.f32 1.0, %v1180
  %v1182 = vrcp.pop %v864
  %v1183 = vmul.f32 %v864, %v1182
  %v1184 = vsub.f32 1.0, %v1183
  %v1185 = vmul.f32 %v1182, %v1184
  %v1186 = vadd.f32 %v1182, %v1185
  %vm1187 = vweird.f32 %v864
  %vm1188 = vweird.f32 %v1182
  %vm1189 = vmor %vm1187, %vm1188
  %v1190 = vsel %vm1189, %v1182, %v1186
  %v1191 = vand.u32 2147483647, %v864
  %vm1192 = vcmp.eq.f32.partialorder %v1191, 8.507059e+37
  %v1193 = vand.u32 %v864, 2147483648
  %v1194 = vor.u32 1.1754944e-38, %v1193
  %v1195 = vsel %vm1192, %v1194, %v1190
  %v1196 = vmul.f32 1.0, %v1195
  %v1197 = vrcp.pop %v865
  %v1198 = vmul.f32 %v865, %v1197
  %v1199 = vsub.f32 1.0, %v1198
  %v1200 = vmul.f32 %v1197, %v1199
  %v1201 = vadd.f32 %v1197, %v1200
  %vm1202 = vweird.f32 %v865
  %vm1203 = vweird.f32 %v1197
  %vm1204 = vmor %vm1202, %vm1203
  %v1205 = vsel %vm1204, %v1197, %v1201
  %v1206 = vand.u32 2147483647, %v865
  %vm1207 = vcmp.eq.f32.partialorder %v1206, 8.507059e+37
  %v1208 = vand.u32 %v865, 2147483648
  %v1209 = vor.u32 1.1754944e-38, %v1208
  %v1210 = vsel %vm1207, %v1209, %v1205
  %v1211 = vmul.f32 1.0, %v1210
  %v1212 = vrcp.pop %v866
  %v1213 = vmul.f32 %v866, %v1212
  %v1214 = vsub.f32 1.0, %v1213
  %v1215 = vmul.f32 %v1212, %v1214
  %v1216 = vadd.f32 %v1212, %v1215
  %vm1217 = vweird.f32 %v866
  %vm1218 = vweird.f32 %v1212
  %vm1219 = vmor %vm1217, %vm1218
  %v1220 = vsel %vm1219, %v1212, %v1216
  %v1221 = vand.u32 2147483647, %v866
  %vm1222 = vcmp.eq.f32.partialorder %v1221, 8.507059e+37
  %v1223 = vand.u32 %v866, 2147483648
  %v1224 = vor.u32 1.1754944e-38, %v1223
  %v1225 = vsel %vm1222, %v1224, %v1220
  %v1226 = vmul.f32 1.0, %v1225
  %v1227 = vrcp.pop %v867
  %v1228 = vmul.f32 %v867, %v1227
  %v1229 = vsub.f32 1.0, %v1228
  %v1230 = vmul.f32 %v1227, %v1229
  %v1231 = vadd.f32 %v1227, %v1230
  %vm1232 = vweird.f32 %v867
  %vm1233 = vweird.f32 %v1227
  %vm1234 = vmor %vm1232, %vm1233
  %v1235 = vsel %vm1234, %v1227, %v1231
  %v1236 = vand.u32 2147483647, %v867
  %vm1237 = vcmp.eq.f32.partialorder %v1236, 8.507059e+37
  %v1238 = vand.u32 %v867, 2147483648
  %v1239 = vor.u32 1.1754944e-38, %v1238
  %v1240 = vsel %vm1237, %v1239, %v1235
  %v1241 = vmul.f32 1.0, %v1240
  %v1242 = vrcp.pop %v868
  %v1243 = vmul.f32 %v868, %v1242
  %v1244 = vsub.f32 1.0, %v1243
  %v1245 = vmul.f32 %v1242, %v1244
  %v1246 = vadd.f32 %v1242, %v1245
  %vm1247 = vweird.f32 %v868
  %vm1248 = vweird.f32 %v1242
  %vm1249 = vmor %vm1247, %vm1248
  %v1250 = vsel %vm1249, %v1242, %v1246
  %v1251 = vand.u32 2147483647, %v868
  %vm1252 = vcmp.eq.f32.partialorder %v1251, 8.507059e+37
  %v1253 = vand.u32 %v868, 2147483648
  %v1254 = vor.u32 1.1754944e-38, %v1253
  %v1255 = vsel %vm1252, %v1254, %v1250
  %v1256 = vmul.f32 1.0, %v1255
  %v1257 = vrcp.pop %v869
  %v1258 = vmul.f32 %v869, %v1257
  %v1259 = vsub.f32 1.0, %v1258
  %v1260 = vmul.f32 %v1257, %v1259
  %v1261 = vadd.f32 %v1257, %v1260
  %vm1262 = vweird.f32 %v869
  %vm1263 = vweird.f32 %v1257
  %vm1264 = vmor %vm1262, %vm1263
  %v1265 = vsel %vm1264, %v1257, %v1261
  %v1266 = vand.u32 2147483647, %v869
  %vm1267 = vcmp.eq.f32.partialorder %v1266, 8.507059e+37
  %v1268 = vand.u32 %v869, 2147483648
  %v1269 = vor.u32 1.1754944e-38, %v1268
  %v1270 = vsel %vm1267, %v1269, %v1265
  %v1271 = vmul.f32 1.0, %v1270
  %v1272 = vrcp.pop %v870
  %v1273 = vmul.f32 %v870, %v1272
  %v1274 = vsub.f32 1.0, %v1273
  %v1275 = vmul.f32 %v1272, %v1274
  %v1276 = vadd.f32 %v1272, %v1275
  %vm1277 = vweird.f32 %v870
  %vm1278 = vweird.f32 %v1272
  %vm1279 = vmor %vm1277, %vm1278
  %v1280 = vsel %vm1279, %v1272, %v1276
  %v1281 = vand.u32 2147483647, %v870
  %vm1282 = vcmp.eq.f32.partialorder %v1281, 8.507059e+37
  %v1283 = vand.u32 %v870, 2147483648
  %v1284 = vor.u32 1.1754944e-38, %v1283
  %v1285 = vsel %vm1282, %v1284, %v1280
  %v1286 = vmul.f32 1.0, %v1285
  %v1287 = vrcp.pop %v871
  %v1288 = vmul.f32 %v871, %v1287
  %v1289 = vsub.f32 1.0, %v1288
  %v1290 = vmul.f32 %v1287, %v1289
  %v1291 = vadd.f32 %v1287, %v1290
  %vm1292 = vweird.f32 %v871
  %vm1293 = vweird.f32 %v1287
  %vm1294 = vmor %vm1292, %vm1293
  %v1295 = vsel %vm1294, %v1287, %v1291
  %v1296 = vand.u32 2147483647, %v871
  %vm1297 = vcmp.eq.f32.partialorder %v1296, 8.507059e+37
  %v1298 = vand.u32 %v871, 2147483648
  %v1299 = vor.u32 1.1754944e-38, %v1298
  %v1300 = vsel %vm1297, %v1299, %v1295
  %v1301 = vmul.f32 1.0, %v1300
  %v1302 = vrcp.pop %v872
  %v1303 = vmul.f32 %v872, %v1302
  %v1304 = vsub.f32 1.0, %v1303
  %v1305 = vmul.f32 %v1302, %v1304
  %v1306 = vadd.f32 %v1302, %v1305
  %vm1307 = vweird.f32 %v872
  %vm1308 = vweird.f32 %v1302
  %vm1309 = vmor %vm1307, %vm1308
  %v1310 = vsel %vm1309, %v1302, %v1306
  %v1311 = vand.u32 2147483647, %v872
  %vm1312 = vcmp.eq.f32.partialorder %v1311, 8.507059e+37
  %v1313 = vand.u32 %v872, 2147483648
  %v1314 = vor.u32 1.1754944e-38, %v1313
  %v1315 = vsel %vm1312, %v1314, %v1310
  %v1316 = vmul.f32 1.0, %v1315
  %v1317 = vrcp.pop %v873
  %v1318 = vmul.f32 %v873, %v1317
  %v1319 = vsub.f32 1.0, %v1318
  %v1320 = vmul.f32 %v1317, %v1319
  %v1321 = vadd.f32 %v1317, %v1320
  %vm1322 = vweird.f32 %v873
  %vm1323 = vweird.f32 %v1317
  %vm1324 = vmor %vm1322, %vm1323
  %v1325 = vsel %vm1324, %v1317, %v1321
  %v1326 = vand.u32 2147483647, %v873
  %vm1327 = vcmp.eq.f32.partialorder %v1326, 8.507059e+37
  %v1328 = vand.u32 %v873, 2147483648
  %v1329 = vor.u32 1.1754944e-38, %v1328
  %v1330 = vsel %vm1327, %v1329, %v1325
  %v1331 = vmul.f32 1.0, %v1330
  %v1332 = vrcp.pop %v874
  %v1333 = vmul.f32 %v874, %v1332
  %v1334 = vsub.f32 1.0, %v1333
  %v1335 = vmul.f32 %v1332, %v1334
  %v1336 = vadd.f32 %v1332, %v1335
  %vm1337 = vweird.f32 %v874
  %vm1338 = vweird.f32 %v1332
  %vm1339 = vmor %vm1337, %vm1338
  %v1340 = vsel %vm1339, %v1332, %v1336
  %v1341 = vand.u32 2147483647, %v874
  %vm1342 = vcmp.eq.f32.partialorder %v1341, 8.507059e+37
  %v1343 = vand.u32 %v874, 2147483648
  %v1344 = vor.u32 1.1754944e-38, %v1343
  %v1345 = vsel %vm1342, %v1344, %v1340
  %v1346 = vmul.f32 1.0, %v1345
  %v1347 = vrcp.pop %v875
  %v1348 = vmul.f32 %v875, %v1347
  %v1349 = vsub.f32 1.0, %v1348
  %v1350 = vmul.f32 %v1347, %v1349
  %v1351 = vadd.f32 %v1347, %v1350
  %vm1352 = vweird.f32 %v875
  %vm1353 = vweird.f32 %v1347
  %vm1354 = vmor %vm1352, %vm1353
  %v1355 = vsel %vm1354, %v1347, %v1351
  %v1356 = vand.u32 2147483647, %v875
  %vm1357 = vcmp.eq.f32.partialorder %v1356, 8.507059e+37
  %v1358 = vand.u32 %v875, 2147483648
  %v1359 = vor.u32 1.1754944e-38, %v1358
  %v1360 = vsel %vm1357, %v1359, %v1355
  %v1361 = vmul.f32 1.0, %v1360
  %v1362 = vrcp.pop %v876
  %v1363 = vmul.f32 %v876, %v1362
  %v1364 = vsub.f32 1.0, %v1363
  %v1365 = vmul.f32 %v1362, %v1364
  %v1366 = vadd.f32 %v1362, %v1365
  %vm1367 = vweird.f32 %v876
  %vm1368 = vweird.f32 %v1362
  %vm1369 = vmor %vm1367, %vm1368
  %v1370 = vsel %vm1369, %v1362, %v1366
  %v1371 = vand.u32 2147483647, %v876
  %vm1372 = vcmp.eq.f32.partialorder %v1371, 8.507059e+37
  %v1373 = vand.u32 %v876, 2147483648
  %v1374 = vor.u32 1.1754944e-38, %v1373
  %v1375 = vsel %vm1372, %v1374, %v1370
  %v1376 = vmul.f32 1.0, %v1375
  %v1377 = vrcp.pop %v877
  %v1378 = vmul.f32 %v877, %v1377
  %v1379 = vsub.f32 1.0, %v1378
  %v1380 = vmul.f32 %v1377, %v1379
  %v1381 = vadd.f32 %v1377, %v1380
  %vm1382 = vweird.f32 %v877
  %vm1383 = vweird.f32 %v1377
  %vm1384 = vmor %vm1382, %vm1383
  %v1385 = vsel %vm1384, %v1377, %v1381
  %v1386 = vand.u32 2147483647, %v877
  %vm1387 = vcmp.eq.f32.partialorder %v1386, 8.507059e+37
  %v1388 = vand.u32 %v877, 2147483648
  %v1389 = vor.u32 1.1754944e-38, %v1388
  %v1390 = vsel %vm1387, %v1389, %v1385
  %v1391 = vmul.f32 1.0, %v1390
  %v1392 = vrcp.pop %v878
  %v1393 = vmul.f32 %v878, %v1392
  %v1394 = vsub.f32 1.0, %v1393
  %v1395 = vmul.f32 %v1392, %v1394
  %v1396 = vadd.f32 %v1392, %v1395
  %vm1397 = vweird.f32 %v878
  %vm1398 = vweird.f32 %v1392
  %vm1399 = vmor %vm1397, %vm1398
  %v1400 = vsel %vm1399, %v1392, %v1396
  %v1401 = vand.u32 2147483647, %v878
  %vm1402 = vcmp.eq.f32.partialorder %v1401, 8.507059e+37
  %v1403 = vand.u32 %v878, 2147483648
  %v1404 = vor.u32 1.1754944e-38, %v1403
  %v1405 = vsel %vm1402, %v1404, %v1400
  %v1406 = vmul.f32 1.0, %v1405
  %v1407 = vrcp.pop %v879
  %v1408 = vmul.f32 %v879, %v1407
  %v1409 = vsub.f32 1.0, %v1408
  %v1410 = vmul.f32 %v1407, %v1409
  %v1411 = vadd.f32 %v1407, %v1410
  %vm1412 = vweird.f32 %v879
  %vm1413 = vweird.f32 %v1407
  %vm1414 = vmor %vm1412, %vm1413
  %v1415 = vsel %vm1414, %v1407, %v1411
  %v1416 = vand.u32 2147483647, %v879
  %vm1417 = vcmp.eq.f32.partialorder %v1416, 8.507059e+37
  %v1418 = vand.u32 %v879, 2147483648
  %v1419 = vor.u32 1.1754944e-38, %v1418
  %v1420 = vsel %vm1417, %v1419, %v1415
  %v1421 = vmul.f32 1.0, %v1420
  %v1422 = vrcp.pop %v880
  %v1423 = vmul.f32 %v880, %v1422
  %v1424 = vsub.f32 1.0, %v1423
  %v1425 = vmul.f32 %v1422, %v1424
  %v1426 = vadd.f32 %v1422, %v1425
  %vm1427 = vweird.f32 %v880
  %vm1428 = vweird.f32 %v1422
  %vm1429 = vmor %vm1427, %vm1428
  %v1430 = vsel %vm1429, %v1422, %v1426
  %v1431 = vand.u32 2147483647, %v880
  %vm1432 = vcmp.eq.f32.partialorder %v1431, 8.507059e+37
  %v1433 = vand.u32 %v880, 2147483648
  %v1434 = vor.u32 1.1754944e-38, %v1433
  %v1435 = vsel %vm1432, %v1434, %v1430
  %v1436 = vmul.f32 1.0, %v1435
  %v1437 = vrcp.pop %v881
  %v1438 = vmul.f32 %v881, %v1437
  %v1439 = vsub.f32 1.0, %v1438
  %v1440 = vmul.f32 %v1437, %v1439
  %v1441 = vadd.f32 %v1437, %v1440
  %vm1442 = vweird.f32 %v881
  %vm1443 = vweird.f32 %v1437
  %vm1444 = vmor %vm1442, %vm1443
  %v1445 = vsel %vm1444, %v1437, %v1441
  %v1446 = vand.u32 2147483647, %v881
  %vm1447 = vcmp.eq.f32.partialorder %v1446, 8.507059e+37
  %v1448 = vand.u32 %v881, 2147483648
  %v1449 = vor.u32 1.1754944e-38, %v1448
  %v1450 = vsel %vm1447, %v1449, %v1445
  %v1451 = vmul.f32 1.0, %v1450
  %v1452 = vmul.f32 %v692, %v896
  %v1453 = vmul.f32 %v693, %v911
  %v1454 = vmul.f32 %v694, %v926
  %v1455 = vmul.f32 %v695, %v941
  %v1456 = vmul.f32 %v696, %v956
  %v1457 = vmul.f32 %v697, %v971
  %v1458 = vmul.f32 %v698, %v986
  %v1459 = vmul.f32 %v699, %v1001
  %v1460 = vmul.f32 %v700, %v1016
  %v1461 = vmul.f32 %v701, %v1031
  %v1462 = vmul.f32 %v702, %v1046
  %v1463 = vmul.f32 %v703, %v1061
  %v1464 = vmul.f32 %v704, %v1076
  %v1465 = vmul.f32 %v705, %v1091
  %v1466 = vmul.f32 %v706, %v1106
  %v1467 = vmul.f32 %v707, %v1121
  %v1468 = vmul.f32 %v708, %v1136
  %v1469 = vmul.f32 %v709, %v1151
  %v1470 = vmul.f32 %v710, %v1166
  %v1471 = vmul.f32 %v711, %v1181
  %v1472 = vmul.f32 %v712, %v1196
  %v1473 = vmul.f32 %v713, %v1211
  %v1474 = vmul.f32 %v714, %v1226
  %v1475 = vmul.f32 %v715, %v1241
  %v1476 = vmul.f32 %v716, %v1256
  %v1477 = vmul.f32 %v717, %v1271
  %v1478 = vmul.f32 %v718, %v1286
  %v1479 = vmul.f32 %v719, %v1301
  %v1480 = vmul.f32 %v720, %v1316
  %v1481 = vmul.f32 %v721, %v1331
  %v1482 = vmul.f32 %v722, %v1346
  %v1483 = vmul.f32 %v723, %v1361
  %v1484 = vmul.f32 %v724, %v1376
  %v1485 = vmul.f32 %v725, %v1391
  %v1486 = vmul.f32 %v726, %v1406
  %v1487 = vmul.f32 %v727, %v1421
  %v1488 = vmul.f32 %v728, %v1436
  %v1489 = vmul.f32 %v729, %v1451
  %v1490 = vld [vmem:[%s3] sm:$0x1]
  %v1492 = vperm.slane %v1490, 0
  %v1494 = vmul.f32 %v1452, %v1492
  %v1495 = vmul.f32 %v1453, %v1492
  %v1496 = vmul.f32 %v1454, %v1492
  %v1497 = vmul.f32 %v1455, %v1492
  %v1498 = vmul.f32 %v1456, %v1492
  %v1499 = vmul.f32 %v1457, %v1492
  %v1500 = vmul.f32 %v1458, %v1492
  %v1501 = vmul.f32 %v1459, %v1492
  %v1502 = vmul.f32 %v1460, %v1492
  %v1503 = vmul.f32 %v1461, %v1492
  %v1504 = vmul.f32 %v1462, %v1492
  %v1505 = vmul.f32 %v1463, %v1492
  %v1506 = vmul.f32 %v1464, %v1492
  %v1507 = vmul.f32 %v1465, %v1492
  %v1508 = vmul.f32 %v1466, %v1492
  %v1509 = vmul.f32 %v1467, %v1492
  %v1510 = vmul.f32 %v1468, %v1492
  %v1511 = vmul.f32 %v1469, %v1492
  %v1512 = vmul.f32 %v1470, %v1492
  %v1513 = vmul.f32 %v1471, %v1492
  %v1514 = vmul.f32 %v1472, %v1492
  %v1515 = vmul.f32 %v1473, %v1492
  %v1516 = vmul.f32 %v1474, %v1492
  %v1517 = vmul.f32 %v1475, %v1492
  %v1518 = vmul.f32 %v1476, %v1492
  %v1519 = vmul.f32 %v1477, %v1492
  %v1520 = vmul.f32 %v1478, %v1492
  %v1521 = vmul.f32 %v1479, %v1492
  %v1522 = vmul.f32 %v1480, %v1492
  %v1523 = vmul.f32 %v1481, %v1492
  %v1524 = vmul.f32 %v1482, %v1492
  %v1525 = vmul.f32 %v1483, %v1492
  %v1526 = vmul.f32 %v1484, %v1492
  %v1527 = vmul.f32 %v1485, %v1492
  %v1528 = vmul.f32 %v1486, %v1492
  %v1529 = vmul.f32 %v1487, %v1492
  %v1530 = vmul.f32 %v1488, %v1492
  %v1531 = vmul.f32 %v1489, %v1492
  %1532 = vadd.xlane.f32.xlu0 %v1494
  %v1533 = vpop.xlane.xlu0 %1532
  %1534 = vadd.xlane.f32.xlu0 %v1495
  %v1535 = vpop.xlane.xlu0 %1534
  %1536 = vadd.xlane.f32.xlu0 %v1496
  %v1537 = vpop.xlane.xlu0 %1536
  %1538 = vadd.xlane.f32.xlu0 %v1497
  %v1539 = vpop.xlane.xlu0 %1538
  %1540 = vadd.xlane.f32.xlu0 %v1498
  %v1541 = vpop.xlane.xlu0 %1540
  %1542 = vadd.xlane.f32.xlu0 %v1499
  %v1543 = vpop.xlane.xlu0 %1542
  %1544 = vadd.xlane.f32.xlu0 %v1500
  %v1545 = vpop.xlane.xlu0 %1544
  %1546 = vadd.xlane.f32.xlu0 %v1501
  %v1547 = vpop.xlane.xlu0 %1546
  %1548 = vadd.xlane.f32.xlu0 %v1502
  %v1549 = vpop.xlane.xlu0 %1548
  %1550 = vadd.xlane.f32.xlu0 %v1503
  %v1551 = vpop.xlane.xlu0 %1550
  %1552 = vadd.xlane.f32.xlu0 %v1504
  %v1553 = vpop.xlane.xlu0 %1552
  %1554 = vadd.xlane.f32.xlu0 %v1505
  %v1555 = vpop.xlane.xlu0 %1554
  %1556 = vadd.xlane.f32.xlu0 %v1506
  %v1557 = vpop.xlane.xlu0 %1556
  %1558 = vadd.xlane.f32.xlu0 %v1507
  %v1559 = vpop.xlane.xlu0 %1558
  %1560 = vadd.xlane.f32.xlu0 %v1508
  %v1561 = vpop.xlane.xlu0 %1560
  %1562 = vadd.xlane.f32.xlu0 %v1509
  %v1563 = vpop.xlane.xlu0 %1562
  %1564 = vadd.xlane.f32.xlu0 %v1510
  %v1565 = vpop.xlane.xlu0 %1564
  %1566 = vadd.xlane.f32.xlu0 %v1511
  %v1567 = vpop.xlane.xlu0 %1566
  %1568 = vadd.xlane.f32.xlu0 %v1512
  %v1569 = vpop.xlane.xlu0 %1568
  %1570 = vadd.xlane.f32.xlu0 %v1513
  %v1571 = vpop.xlane.xlu0 %1570
  %1572 = vadd.xlane.f32.xlu0 %v1514
  %v1573 = vpop.xlane.xlu0 %1572
  %1574 = vadd.xlane.f32.xlu0 %v1515
  %v1575 = vpop.xlane.xlu0 %1574
  %1576 = vadd.xlane.f32.xlu0 %v1516
  %v1577 = vpop.xlane.xlu0 %1576
  %1578 = vadd.xlane.f32.xlu0 %v1517
  %v1579 = vpop.xlane.xlu0 %1578
  %1580 = vadd.xlane.f32.xlu0 %v1518
  %v1581 = vpop.xlane.xlu0 %1580
  %1582 = vadd.xlane.f32.xlu0 %v1519
  %v1583 = vpop.xlane.xlu0 %1582
  %1584 = vadd.xlane.f32.xlu0 %v1520
  %v1585 = vpop.xlane.xlu0 %1584
  %1586 = vadd.xlane.f32.xlu0 %v1521
  %v1587 = vpop.xlane.xlu0 %1586
  %1588 = vadd.xlane.f32.xlu0 %v1522
  %v1589 = vpop.xlane.xlu0 %1588
  %1590 = vadd.xlane.f32.xlu0 %v1523
  %v1591 = vpop.xlane.xlu0 %1590
  %1592 = vadd.xlane.f32.xlu0 %v1524
  %v1593 = vpop.xlane.xlu0 %1592
  %1594 = vadd.xlane.f32.xlu0 %v1525
  %v1595 = vpop.xlane.xlu0 %1594
  %1596 = vadd.xlane.f32.xlu0 %v1526
  %v1597 = vpop.xlane.xlu0 %1596
  %1598 = vadd.xlane.f32.xlu0 %v1527
  %v1599 = vpop.xlane.xlu0 %1598
  %1600 = vadd.xlane.f32.xlu0 %v1528
  %v1601 = vpop.xlane.xlu0 %1600
  %1602 = vadd.xlane.f32.xlu0 %v1529
  %v1603 = vpop.xlane.xlu0 %1602
  %1604 = vadd.xlane.f32.xlu0 %v1530
  %v1605 = vpop.xlane.xlu0 %1604
  %1606 = vadd.xlane.f32.xlu0 %v1531
  %v1607 = vpop.xlane.xlu0 %1606
  %v1608 = vld [vmem:[#allocation2] sm:$0x1]
  %v1610 = vperm.slane %v1608, 0
  %v1612 = vadd.f32 %v1533, %v1610
  %v1613 = vadd.f32 %v1535, %v1610
  %v1614 = vadd.f32 %v1537, %v1610
  %v1615 = vadd.f32 %v1539, %v1610
  %v1616 = vadd.f32 %v1541, %v1610
  %v1617 = vadd.f32 %v1543, %v1610
  %v1618 = vadd.f32 %v1545, %v1610
  %v1619 = vadd.f32 %v1547, %v1610
  %v1620 = vadd.f32 %v1549, %v1610
  %v1621 = vadd.f32 %v1551, %v1610
  %v1622 = vadd.f32 %v1553, %v1610
  %v1623 = vadd.f32 %v1555, %v1610
  %v1624 = vadd.f32 %v1557, %v1610
  %v1625 = vadd.f32 %v1559, %v1610
  %v1626 = vadd.f32 %v1561, %v1610
  %v1627 = vadd.f32 %v1563, %v1610
  %v1628 = vadd.f32 %v1565, %v1610
  %v1629 = vadd.f32 %v1567, %v1610
  %v1630 = vadd.f32 %v1569, %v1610
  %v1631 = vadd.f32 %v1571, %v1610
  %v1632 = vadd.f32 %v1573, %v1610
  %v1633 = vadd.f32 %v1575, %v1610
  %v1634 = vadd.f32 %v1577, %v1610
  %v1635 = vadd.f32 %v1579, %v1610
  %v1636 = vadd.f32 %v1581, %v1610
  %v1637 = vadd.f32 %v1583, %v1610
  %v1638 = vadd.f32 %v1585, %v1610
  %v1639 = vadd.f32 %v1587, %v1610
  %v1640 = vadd.f32 %v1589, %v1610
  %v1641 = vadd.f32 %v1591, %v1610
  %v1642 = vadd.f32 %v1593, %v1610
  %v1643 = vadd.f32 %v1595, %v1610
  %v1644 = vadd.f32 %v1597, %v1610
  %v1645 = vadd.f32 %v1599, %v1610
  %v1646 = vadd.f32 %v1601, %v1610
  %v1647 = vadd.f32 %v1603, %v1610
  %v1648 = vadd.f32 %v1605, %v1610
  %v1649 = vadd.f32 %v1607, %v1610
  %vm1650 = vcmask 7168
  %1651 = vst.msk [vmem:[%s5] sm:$0xff] %vm1650, %v1612
  %1652 = vst.msk [vmem:[%s5 + $0x8] sm:$0xff] %vm1650, %v1613
  %1653 = vst.msk [vmem:[%s5 + $0x10] sm:$0xff] %vm1650, %v1614
  %1654 = vst.msk [vmem:[%s5 + $0x18] sm:$0xff] %vm1650, %v1615
  %1655 = vst.msk [vmem:[%s5 + $0x20] sm:$0xff] %vm1650, %v1616
  %1656 = vst.msk [vmem:[%s5 + $0x28] sm:$0xff] %vm1650, %v1617
  %1657 = vst.msk [vmem:[%s5 + $0x30] sm:$0xff] %vm1650, %v1618
  %1658 = vst.msk [vmem:[%s5 + $0x38] sm:$0xff] %vm1650, %v1619
  %1659 = vst.msk [vmem:[%s5 + $0x40] sm:$0xff] %vm1650, %v1620
  %1660 = vst.msk [vmem:[%s5 + $0x48] sm:$0xff] %vm1650, %v1621
  %1661 = vst.msk [vmem:[%s5 + $0x50] sm:$0xff] %vm1650, %v1622
  %1662 = vst.msk [vmem:[%s5 + $0x58] sm:$0xff] %vm1650, %v1623
  %1663 = vst.msk [vmem:[%s5 + $0x60] sm:$0xff] %vm1650, %v1624
  %1664 = vst.msk [vmem:[%s5 + $0x68] sm:$0xff] %vm1650, %v1625
  %1665 = vst.msk [vmem:[%s5 + $0x70] sm:$0xff] %vm1650, %v1626
  %1666 = vst.msk [vmem:[%s5 + $0x78] sm:$0xff] %vm1650, %v1627
  %1667 = vst.msk [vmem:[%s5 + $0x80] sm:$0xff] %vm1650, %v1628
  %1668 = vst.msk [vmem:[%s5 + $0x88] sm:$0xff] %vm1650, %v1629
  %1669 = vst.msk [vmem:[%s5 + $0x90] sm:$0xff] %vm1650, %v1630
  %1670 = vst.msk [vmem:[%s5 + $0x98] sm:$0xff] %vm1650, %v1631
  %1671 = vst.msk [vmem:[%s5 + $0xa0] sm:$0xff] %vm1650, %v1632
  %1672 = vst.msk [vmem:[%s5 + $0xa8] sm:$0xff] %vm1650, %v1633
  %1673 = vst.msk [vmem:[%s5 + $0xb0] sm:$0xff] %vm1650, %v1634
  %1674 = vst.msk [vmem:[%s5 + $0xb8] sm:$0xff] %vm1650, %v1635
  %1675 = vst.msk [vmem:[%s5 + $0xc0] sm:$0xff] %vm1650, %v1636
  %1676 = vst.msk [vmem:[%s5 + $0xc8] sm:$0xff] %vm1650, %v1637
  %1677 = vst.msk [vmem:[%s5 + $0xd0] sm:$0xff] %vm1650, %v1638
  %1678 = vst.msk [vmem:[%s5 + $0xd8] sm:$0xff] %vm1650, %v1639
  %1679 = vst.msk [vmem:[%s5 + $0xe0] sm:$0xff] %vm1650, %v1640
  %1680 = vst.msk [vmem:[%s5 + $0xe8] sm:$0xff] %vm1650, %v1641
  %1681 = vst.msk [vmem:[%s5 + $0xf0] sm:$0xff] %vm1650, %v1642
  %1682 = vst.msk [vmem:[%s5 + $0xf8] sm:$0xff] %vm1650, %v1643
  %1683 = vst.msk [vmem:[%s5 + $0x100] sm:$0xff] %vm1650, %v1644
  %1684 = vst.msk [vmem:[%s5 + $0x108] sm:$0xff] %vm1650, %v1645
  %1685 = vst.msk [vmem:[%s5 + $0x110] sm:$0xff] %vm1650, %v1646
  %1686 = vst.msk [vmem:[%s5 + $0x118] sm:$0xff] %vm1650, %v1647
  %1687 = vst.msk [vmem:[%s5 + $0x120] sm:$0xff] %vm1650, %v1648
  %1688 = vst.msk [vmem:[%s5 + $0x128] sm:$0xff] %vm1650, %v1649
  // Predicated region
  $region22: #{attn_net_gated.1} parent=0 // pred_check
    _
  $region23: #{attn_net_gated.1} parent=0 // pred_check_branch
    %1690 = sbr.rel (0) target = $region25
  $region24: #{attn_net_gated.1} parent=0 // pred_region
    _
  $region25: #{attn_net_gated.1} parent=0 // pred_fallthru
    _
  // Predicated region
  $region26: #{attn_net_gated.1} parent=0 // pred_check
    _
  $region27: #{attn_net_gated.1} parent=0 // pred_check_branch
    %1692 = sbr.rel (0) target = $region29
  $region28: #{attn_net_gated.1} parent=0 // pred_region
    _
  $region29: #{attn_net_gated.1} parent=0 // pred_fallthru
    _

</llo_original>
